<compile_context>
chip_gen: v7x
topology: tpu7x:2x2x1
jax: 0.10.0
libtpu: 0.0.40
codegen_flags: <defaults>
</compile_context>

<pallas_src>
import functools

import jax
import jax.numpy as jnp
from jax.experimental import pallas as pl
from jax.experimental.pallas import tpu as pltpu

LANE = 128
N_FEATS = 64

# (cin, cout, dilation, relu) for every conv, in forward-execution order.
CONV_SPECS = [
    (1,    64,  1, True),                          # head: BBlock(1 -> n)
    (64,   64,  2, True), (64,   64, 1, True),     # d_l0: DBlock_com1(n, n)
    (256,  128, 1, True),                          # d_l1: BBlock(4n -> 2n)
    (128,  128, 2, True), (128,  128, 1, True),    # d_l1: DBlock_com1(2n, 2n)
    (512,  256, 1, True),                          # d_l2: BBlock(8n -> 4n)
    (256,  256, 2, True), (256,  256, 1, True),    # d_l2: DBlock_com1(4n, 4n)
    (1024, 512, 1, True),                          # pro_l3: BBlock(16n -> 8n)
    (512,  512, 2, True), (512,  512, 3, True),    # pro_l3: DBlock_com(8n, 8n)
    (512,  512, 3, True), (512,  512, 2, True),    # pro_l3: DBlock_inv(8n, 8n)
    (512, 1024, 1, True),                          # pro_l3: BBlock(8n -> 16n)
    (256,  256, 2, True), (256,  256, 1, True),    # i_l2: DBlock_inv1(4n, 4n)
    (256,  512, 1, True),                          # i_l2: BBlock(4n -> 8n)
    (128,  128, 2, True), (128,  128, 1, True),    # i_l1: DBlock_inv1(2n, 2n)
    (128,  256, 1, True),                          # i_l1: BBlock(2n -> 4n)
    (64,   64,  2, True), (64,   64, 1, True),     # i_l0: DBlock_inv1(n, n)
    (64,   1,   1, False),                         # tail: conv(n -> 1)
]


def _round_up(v, m):
    return (v + m - 1) // m * m


# ----------------------------- Pallas kernel ------------------------------ #
def _conv3_kernel(x_ref, w_ref, b_ref, o_ref, *, row_stride, m_out, relu):
    """One 3x3 (dilated) conv as 3 aligned tap-row GEMMs + fused bias/ReLU.

    x_ref: (S, 3*Cin_p)      bf16  staged padded activations of one image
                                   (kx tap shifts baked into the channel axis)
    w_ref: (3, 3*Cin_p, CT)  bf16  per-ky weight slabs of this Cout tile
    b_ref: (1, CT)           f32
    o_ref: (M_out, CT)       bf16  anchor rows (y < H, all Wp columns)
    """
    acc = None
    for ky in range(3):                      # static unrolled loop of 3
        off = ky * row_stride                # row_stride = Wp*d, multiple of 16
        xt = x_ref[off:off + m_out, :]       # aligned static slice (VMEM view)
        p = jnp.dot(xt, w_ref[ky], preferred_element_type=jnp.float32)
        acc = p if acc is None else acc + p
    r = acc + b_ref[...]
    if relu:
        r = jnp.maximum(r, 0.0)
    o_ref[...] = r.astype(o_ref.dtype)


def conv3x3(x, w, b, *, dilation=1, relu=False, keep_padded=False):
    """3x3 'same' conv (padding == dilation), NHWC, via the Pallas kernel.

    x: (B, H, W, Cin_x)  -- Cin_x may already be lane-padded (extra chans = 0)
    w: (3, 3, Cin, Cout) (HWIO)     b: (Cout,)
    keep_padded: return the lane-padded Cout_p channels (extras are exact 0s).
    """
    B, H, W, Cin_x = x.shape
    Cin_w, Cout = w.shape[2], w.shape[3]
    d = dilation

    # Lane-pad channels (zero pad => identical math).
    Cin_p = _round_up(max(Cin_x, Cin_w, LANE), LANE)
    Cout_p = _round_up(max(Cout, LANE), LANE)

    x = x.astype(jnp.bfloat16)
    w = w.astype(jnp.bfloat16)
    if Cin_p != Cin_x:
        x = jnp.pad(x, ((0, 0), (0, 0), (0, 0), (0, Cin_p - Cin_x)))
    if Cin_p != Cin_w or Cout_p != Cout:
        w = jnp.pad(w, ((0, 0), (0, 0), (0, Cin_p - Cin_w), (0, Cout_p - Cout)))
    if Cout_p != Cout:
        b = jnp.pad(b, ((0, Cout_p - Cout),))

    # Padded spatial grid; Wp rounded to 16 so Wp*d (the ky tap stride in
    # flattened rows) is sublane-aligned for bf16.
    Hp = H + 2 * d
    Wp = _round_up(W + 2 * d, 16)
    S = Hp * Wp                    # rows per padded image (multiple of 16)
    M_out = H * Wp                 # anchor rows actually written (mult of 16)
    K3 = 3 * Cin_p
    row_stride = Wp * d            # ky tap offset; multiple of 16

    # Spatially pad, flatten per image, add 2*d halo rows, and bake the three
    # kx shifts (0, d, 2d flattened rows) into the channel axis.
    xp = jnp.pad(x, ((0, 0), (d, d), (d, Wp - W - d), (0, 0)))
    x_flat = xp.reshape(B, S, Cin_p)
    x_flat = jnp.pad(x_flat, ((0, 0), (0, 2 * d), (0, 0)))
    x_staged = jnp.concatenate(
        [x_flat[:, off:off + S, :] for off in (0, d, 2 * d)], axis=-1)

    # (3, 3, Cin_p, Cout_p) -> (3, 3*Cin_p, Cout_p): K axis = (kx, cin),
    # exactly matching the staged activation column order.
    wt = w.reshape(3, K3, Cout_p)
    bt = b.reshape(1, Cout_p).astype(jnp.float32)

    # Output-channel tiling (always exact: Cout_p is a multiple of 128).
    CT = 256 if Cout_p % 256 == 0 else 128
    n_ct = Cout_p // CT

    # VMEM budget from the actual (double-buffered) block sizes plus the f32
    # accumulator temporaries; capped so it is valid on v7x's 64 MiB VMEM.
    blk = (2 * (S * K3 * 2 + 3 * K3 * CT * 2 + M_out * CT * 2 + CT * 4)
           + 3 * M_out * CT * 4)
    vmem_limit = int(min(max(blk + (8 << 20), 24 << 20), 48 << 20))

    out = pl.pallas_call(
        functools.partial(_conv3_kernel, row_stride=row_stride,
                          m_out=M_out, relu=relu),
        out_shape=jax.ShapeDtypeStruct((B, M_out, Cout_p), jnp.bfloat16),
        grid_spec=pltpu.PrefetchScalarGridSpec(
            num_scalar_prefetch=0,
            grid=(n_ct, B),          # inner axis = batch -> weights stay put
            in_specs=[
                pl.BlockSpec((None, S, K3), lambda j, bb: (bb, 0, 0)),
                pl.BlockSpec((3, K3, CT), lambda j, bb: (0, 0, j)),
                pl.BlockSpec((1, CT), lambda j, bb: (0, j)),
            ],
            out_specs=pl.BlockSpec((None, M_out, CT), lambda j, bb: (bb, 0, j)),
        ),
        compiler_params=pltpu.CompilerParams(
            dimension_semantics=("parallel", "parallel"),
            vmem_limit_bytes=vmem_limit,
        ),
    )(x_staged, wt, bt)

    # Anchor rows are laid out on the (H, Wp) grid: keep the valid window.
    out = out.reshape(B, H, Wp, Cout_p)[:, :, :W, :]
    if not keep_padded and Cout_p != Cout:
        out = out[..., :Cout]
    return out


# ------------------------- Haar DWT / IWT (glue) --------------------------- #
def dwt(x):
    """MWCNN dwt_init, NHWC. Output channel order: [LL, HL, LH, HH]."""
    x01 = x[:, 0::2, :, :] / 2
    x02 = x[:, 1::2, :, :] / 2
    x1 = x01[:, :, 0::2, :]
    x2 = x02[:, :, 0::2, :]
    x3 = x01[:, :, 1::2, :]
    x4 = x02[:, :, 1::2, :]
    ll = x1 + x2 + x3 + x4
    hl = -x1 - x2 + x3 + x4
    lh = -x1 + x2 - x3 + x4
    hh = x1 - x2 - x3 + x4
    return jnp.concatenate([ll, hl, lh, hh], axis=-1)


def iwt(x):
    """MWCNN iwt_init, NHWC."""
    B, H, W, C4 = x.shape
    C = C4 // 4
    x1 = x[..., 0 * C:1 * C] / 2
    x2 = x[..., 1 * C:2 * C] / 2
    x3 = x[..., 2 * C:3 * C] / 2
    x4 = x[..., 3 * C:4 * C] / 2
    h00 = x1 - x2 - x3 + x4   # even rows, even cols
    h10 = x1 - x2 + x3 - x4   # odd rows,  even cols
    h01 = x1 + x2 - x3 - x4   # even rows, odd cols
    h11 = x1 + x2 + x3 + x4   # odd rows,  odd cols
    top = jnp.stack([h00, h01], axis=3).reshape(B, H, 2 * W, C)
    bot = jnp.stack([h10, h11], axis=3).reshape(B, H, 2 * W, C)
    return jnp.stack([top, bot], axis=2).reshape(B, 2 * H, 2 * W, C)


# ----------------------------- parameters ---------------------------------- #
def init_params(key):
    params = []
    for i, (cin, cout, _, _) in enumerate(CONV_SPECS):
        kw, kb = jax.random.split(jax.random.fold_in(key, i))
        std = (2.0 / (9 * cin)) ** 0.5
        w = std * jax.random.normal(kw, (3, 3, cin, cout), jnp.float32)
        b = 0.01 * jax.random.normal(kb, (cout,), jnp.float32)
        # Weights cast to bf16 once here (MXU-native); biases stay f32.
        params.append((w.astype(jnp.bfloat16), b))
    return params


# ------------------------------- forward ----------------------------------- #
@jax.jit
def wcnn_forward(x_nhwc, params):
    idx = [0]

    def cv(h, keep_padded=False):
        w, b = params[idx[0]]
        _, _, dil, relu = CONV_SPECS[idx[0]]
        idx[0] += 1
        return conv3x3(h, w, b, dilation=dil, relu=relu, keep_padded=keep_padded)

    # head + d_l0 (64-ch chain kept lane-padded between convs; x0 needs real 64)
    h = cv(x_nhwc, keep_padded=True)
    h = cv(h, keep_padded=True)
    x0 = cv(h)
    h = dwt(x0)
    h = cv(cv(cv(h)))              # d_l1
    x1 = h
    h = dwt(x1)
    h = cv(cv(cv(h)))              # d_l2
    x2 = h
    h = dwt(x2)
    for _ in range(6):             # pro_l3
        h = cv(h)
    h = iwt(h) + x2
    for _ in range(3):             # i_l2
        h = cv(h)
    h = iwt(h) + x1
    for _ in range(3):             # i_l1
        h = cv(h)
    h = iwt(h) + x0
    h = cv(h, keep_padded=True)    # i_l0 conv1
    h = cv(h, keep_padded=True)    # i_l0 conv2 (tail accepts padded input)
    out = cv(h) + x_nhwc           # tail + global residual (promotes to f32)
    assert idx[0] == len(CONV_SPECS)
    return out


if __name__ == "__main__":
    key = jax.random.PRNGKey(0)
    kx, kp, kc = jax.random.split(key, 3)

    # ---- single-conv tolerance check vs XLA's dilated conv (f32 accum) ----
    cin, cout, dil = 128, 128, 2
    kk = jax.random.split(kc, 3)
    xc = jax.random.normal(kk[0], (2, 8, 8, cin), jnp.float32).astype(jnp.bfloat16)
    wc = ((2.0 / (9 * cin)) ** 0.5
          * jax.random.normal(kk[1], (3, 3, cin, cout), jnp.float32)
          ).astype(jnp.bfloat16)
    bc = 0.01 * jax.random.normal(kk[2], (cout,), jnp.float32)
    y_pl = conv3x3(xc, wc, bc, dilation=dil, relu=True).astype(jnp.float32)
    y_ref = jax.lax.conv_general_dilated(
        xc, wc, window_strides=(1, 1), padding=((dil, dil), (dil, dil)),
        rhs_dilation=(dil, dil), dimension_numbers=("NHWC", "HWIO", "NHWC"),
        preferred_element_type=jnp.float32) + bc
    y_ref = jnp.maximum(y_ref, 0.0)
    assert jnp.allclose(y_pl, y_ref, atol=6e-2, rtol=6e-2), (
        float(jnp.max(jnp.abs(y_pl - y_ref))))

    # ---------------------------- full WCNN ----------------------------
    B, C, H, W = 2, 1, 16, 16                      # NCHW, nColor = 1
    x_nchw = jax.random.normal(kx, (B, C, H, W), jnp.float32)
    x_nhwc = jnp.transpose(x_nchw, (0, 2, 3, 1))   # -> NHWC for the kernel

    params = init_params(kp)
    y_nhwc = wcnn_forward(x_nhwc, params)
    y_nchw = jnp.transpose(y_nhwc, (0, 3, 1, 2))
    jax.block_until_ready(y_nchw)

    assert y_nchw.shape == (B, C, H, W)
    assert bool(jnp.all(jnp.isfinite(y_nchw)))
    print("KERNEL_OK")
</pallas_src>

<mosaic_0001>
module attributes {stable_mosaic.version = 11 : i64} {
  func.func @_conv3_kernel(%arg0: i32, %arg1: i32, %arg2: memref<1x192x384xbf16, #tpu.memory_space<vmem>>, %arg3: memref<3x384x128xbf16, #tpu.memory_space<vmem>>, %arg4: memref<1x128xf32, #tpu.memory_space<vmem>>, %arg5: memref<1x128x128xbf16, #tpu.memory_space<vmem>>) attributes {dimension_semantics = [#tpu.dimension_semantics<parallel>, #tpu.dimension_semantics<parallel>], iteration_bounds = array<i64: 1, 2>, scalar_prefetch = 0 : i64, scratch_operands = 0 : i64, tpu.core_type = #tpu.core_type<tc>, window_params = [{transform_indices = @transform_0, window_bounds = array<i64: 1, 192, 384>}, {transform_indices = @transform_1, window_bounds = array<i64: 3, 384, 128>}, {transform_indices = @transform_2, window_bounds = array<i64: 1, 128>}, {transform_indices = @transform_3, window_bounds = array<i64: 1, 128, 128>}]} {
    %c0 = arith.constant 0 : index
    %c0_0 = arith.constant 0 : index
    %c0_1 = arith.constant 0 : index
    %0 = vector.load %arg2[%c0, %c0_0, %c0_1] : memref<1x192x384xbf16, #tpu.memory_space<vmem>>, vector<1x128x384xbf16>
    %1 = vector.shape_cast %0 : vector<1x128x384xbf16> to vector<128x384xbf16>
    %c0_2 = arith.constant 0 : index
    %c0_3 = arith.constant 0 : index
    %c0_4 = arith.constant 0 : index
    %2 = vector.load %arg3[%c0_2, %c0_3, %c0_4] : memref<3x384x128xbf16, #tpu.memory_space<vmem>>, vector<1x384x128xbf16>
    %3 = vector.shape_cast %2 : vector<1x384x128xbf16> to vector<384x128xbf16>
    %cst = arith.constant dense<0.000000e+00> : vector<128x128xf32>
    %4 = tpu.matmul %1, %3, %cst {dimension_numbers = #tpu.dot_dimension_numbers<[1], [0], [0], [1], [0, 0, 1, 1], [], []>} : vector<128x384xbf16>, vector<384x128xbf16>, vector<128x128xf32> -> vector<128x128xf32>
    %c0_5 = arith.constant 0 : index
    %c32 = arith.constant 32 : index
    %c0_6 = arith.constant 0 : index
    %5 = vector.load %arg2[%c0_5, %c32, %c0_6] : memref<1x192x384xbf16, #tpu.memory_space<vmem>>, vector<1x128x384xbf16>
    %6 = vector.shape_cast %5 : vector<1x128x384xbf16> to vector<128x384xbf16>
    %c1 = arith.constant 1 : index
    %c0_7 = arith.constant 0 : index
    %c0_8 = arith.constant 0 : index
    %7 = vector.load %arg3[%c1, %c0_7, %c0_8] : memref<3x384x128xbf16, #tpu.memory_space<vmem>>, vector<1x384x128xbf16>
    %8 = vector.shape_cast %7 : vector<1x384x128xbf16> to vector<384x128xbf16>
    %cst_9 = arith.constant dense<0.000000e+00> : vector<128x128xf32>
    %9 = tpu.matmul %6, %8, %cst_9 {dimension_numbers = #tpu.dot_dimension_numbers<[1], [0], [0], [1], [0, 0, 1, 1], [], []>} : vector<128x384xbf16>, vector<384x128xbf16>, vector<128x128xf32> -> vector<128x128xf32>
    %10 = arith.addf %4, %9 : vector<128x128xf32>
    %c0_10 = arith.constant 0 : index
    %c64 = arith.constant 64 : index
    %c0_11 = arith.constant 0 : index
    %11 = vector.load %arg2[%c0_10, %c64, %c0_11] : memref<1x192x384xbf16, #tpu.memory_space<vmem>>, vector<1x128x384xbf16>
    %12 = vector.shape_cast %11 : vector<1x128x384xbf16> to vector<128x384xbf16>
    %c2 = arith.constant 2 : index
    %c0_12 = arith.constant 0 : index
    %c0_13 = arith.constant 0 : index
    %13 = vector.load %arg3[%c2, %c0_12, %c0_13] : memref<3x384x128xbf16, #tpu.memory_space<vmem>>, vector<1x384x128xbf16>
    %14 = vector.shape_cast %13 : vector<1x384x128xbf16> to vector<384x128xbf16>
    %cst_14 = arith.constant dense<0.000000e+00> : vector<128x128xf32>
    %15 = tpu.matmul %12, %14, %cst_14 {dimension_numbers = #tpu.dot_dimension_numbers<[1], [0], [0], [1], [0, 0, 1, 1], [], []>} : vector<128x384xbf16>, vector<384x128xbf16>, vector<128x128xf32> -> vector<128x128xf32>
    %16 = arith.addf %10, %15 : vector<128x128xf32>
    %c0_15 = arith.constant 0 : index
    %c0_16 = arith.constant 0 : index
    %17 = vector.load %arg4[%c0_15, %c0_16] : memref<1x128xf32, #tpu.memory_space<vmem>>, vector<1x128xf32>
    %18 = vector.broadcast %17 : vector<1x128xf32> to vector<128x128xf32>
    %19 = arith.addf %16, %18 : vector<128x128xf32>
    %cst_17 = arith.constant 0.000000e+00 : f32
    %20 = vector.broadcast %cst_17 : f32 to vector<128x128xf32>
    %21 = arith.maximumf %19, %20 : vector<128x128xf32>
    %22 = arith.truncf %21 : vector<128x128xf32> to vector<128x128xbf16>
    %c0_18 = arith.constant 0 : index
    %c0_19 = arith.constant 0 : index
    %c0_20 = arith.constant 0 : index
    %23 = vector.load %arg5[%c0_18, %c0_19, %c0_20] : memref<1x128x128xbf16, #tpu.memory_space<vmem>>, vector<1x128x128xbf16>
    %24 = vector.shape_cast %23 : vector<1x128x128xbf16> to vector<128x128xbf16>
    %25 = vector.shape_cast %22 : vector<128x128xbf16> to vector<1x128x128xbf16>
    tpu.vector_store %arg5[%c0_18, %c0_19, %c0_20], %25 {strides = array<i32>} : memref<1x128x128xbf16, #tpu.memory_space<vmem>>, vector<1x128x128xbf16>,
    return
  }
  func.func @transform_0(%arg0: i32, %arg1: i32) -> (i32, i32, i32) {
    %c0_i32 = arith.constant 0 : i32
    %c0_i32_0 = arith.constant 0 : i32
    %c0_i32_1 = arith.constant 0 : i32
    return %arg1, %c0_i32, %c0_i32_0 : i32, i32, i32
  }
  func.func @transform_1(%arg0: i32, %arg1: i32) -> (i32, i32, i32) {
    %c0_i32 = arith.constant 0 : i32
    %c0_i32_0 = arith.constant 0 : i32
    %c0_i32_1 = arith.constant 0 : i32
    return %c0_i32, %c0_i32_0, %arg0 : i32, i32, i32
  }
  func.func @transform_2(%arg0: i32, %arg1: i32) -> (i32, i32) {
    %c0_i32 = arith.constant 0 : i32
    %c0_i32_0 = arith.constant 0 : i32
    return %c0_i32, %arg0 : i32, i32
  }
  func.func @transform_3(%arg0: i32, %arg1: i32) -> (i32, i32, i32) {
    %c0_i32 = arith.constant 0 : i32
    %c0_i32_0 = arith.constant 0 : i32
    return %arg1, %c0_i32, %arg0 : i32, i32, i32
  }
}

</mosaic_0001>

<llo_original>
// kernel: tpu_custom_call.1
$region0: #{tpu_custom_call.1}
  #allocation0 [shape = 'u32[]', space=smem, size = 0x4, offset = 0x4, fixed_abs, tag = 'smem constant byte address 0x4 - core index']
  #allocation1 [shape = 'u32[144,128]{1,0:T(1,128)}', space=vmem, size = 0x12000, scoped, tag = 'internal scratch']
  %s0 = inlined_call_operand.hbm [shape: bf16[2,192,384], index: 0, kind: input, shape index: {}]
  %s1 = inlined_call_operand.hbm [shape: bf16[3,384,128], index: 1, kind: input, shape index: {}]
  %s2 = inlined_call_operand.vmem [shape: f32[1,128], index: 2, kind: input, shape index: {}]
  %s3 = inlined_call_operand.hbm [shape: bf16[2,128,128], index: 3, kind: output, shape index: {}]
  %s4 = sld [smem:[#allocation0]]
  $region53: #{tpu_custom_call.1} parent=0
    _
  %s6 = ssub.s32 1, %s4
  %s7 = scalar_select 0, %s6, %s4
  $region1: #{tpu_custom_call.1} parent=0
    #allocation2 [shape = 'u8[294912]{0}', space=vmem, size = 0x48000, scoped, tag = 'input window, operand 0']
    #allocation3 [shape = 's32[2]{0}', space=sflag, size = 0x8, scoped, tag = 'scoped memory for tpu_custom_call.1']
    #allocation4 [shape = 's32[2]{0}', space=sflag, size = 0x8, scoped, tag = 'scoped memory for tpu_custom_call.1']
    #allocation5 [shape = 'u8[294912]{0}', space=vmem, size = 0x48000, scoped, tag = 'input window, operand 1, single buffered']
    #allocation6 [shape = 's32[1]{0}', space=sflag, size = 0x4, scoped, tag = 'scoped memory for tpu_custom_call.1']
    #allocation7 [shape = 'u8[65536]{0}', space=vmem, size = 0x10000, scoped, tag = 'output window, operand 0']
    %8 = vsyncpa [#allocation3], 0
    %s9 = scalar_lea.sflag [#allocation3], 1
    %10 = vsyncpa %s9, 0
    %11 = vsyncpa [#allocation6], 0
    %12 = vsyncpa [#allocation4], 0
    %s13 = scalar_lea.sflag [#allocation4], 1
    %14 = vsyncpa %s13, 0
    loop: start=0, step=1, limit=4
    $region2: #{tpu_custom_call.1} parent=1 // loop_pre_header
      _
    $region3: #{tpu_custom_call.1} parent=1 // loop_header
      %s16 = sphi 0, %s20
      %p17 = scmp.ge.s32.totalorder %s16, 4
      %s23 = sphi 0, %s35
      %s24 = sphi 0, %s31
      %s25 = sphi 0, %s23
      %s26 = sphi 0, %s24
      %s27 = sphi 0, %s25
      %s28 = sphi 0, %s26
      %s38 = sphi 0, %s40
      %s41 = sphi 0, %s38
      %s42 = sphi 0, %s41
      %s58 = sphi 0, %s42
      %s64 = sphi 0, %s66
      %s67 = sphi 0, %s64
      %s68 = sphi 0, %s67
      %s84 = sphi 0, %s68
      %s90 = sphi 0, %s92
      %s93 = sphi 0, %s90
      %s94 = sphi 0, %s93
      %s110 = sphi 0, %s94
      %s118 = sphi 0, %s120
      %s121 = sphi 0, %s118
      %s122 = sphi 0, %s121
      %s138 = sphi 0, %s122
    $region4: #{tpu_custom_call.1} parent=1 // loop_header_branch
      %19 = sbr.rel (%p17) target = $region8
    $region5: #{tpu_custom_call.1} parent=1 // loop_body
      %s21 = ssub.s32 %s16, 1
      %s22 = ssub.s32 %s16, 2
      %s29 = sadd.s32 1, %s24
      %p30 = scmp.ge.s32.totalorder %s29, 2
      %s31 = scalar_select %p30, 0, %s29
      %s32 = sadd.s32 1, %s23
      %s33 = scalar_select %p30, %s32, %s23
      %p34 = scmp.ge.s32.totalorder %s33, 1
      %s35 = scalar_select %p34, 0, %s33
      %s36 = ssub.s32 %s24, %s31
      %p37 = scmp.eq.s32.totalorder %s36, 0
      %s39 = sadd.s32 %s38, 1
      %s40 = scalar_select %p37, %s38, %s39
      %p43 = pneg %p37
      %p44 = scmp.eq.s32.totalorder %s16, 1
      %p45 = por %p43, %p44
      %p46 = scmp.ne.s32.totalorder %s38, %s41
      %p47 = scmp.eq.s32.totalorder %s16, 0
      %p48 = por %p46, %p47
      %p49 = scmp.ne.s32.totalorder %s38, %s41
      %p50 = scmp.eq.s32.totalorder %s21, 1
      %p51 = por %p49, %p50
      %p52 = scmp.ne.s32.totalorder %s41, %s42
      %p53 = scmp.eq.s32.totalorder %s21, 0
      %p54 = por %p52, %p53
      %p55 = scmp.ne.s32.totalorder %s41, %s42
      %p56 = scmp.eq.s32.totalorder %s22, 1
      %p57 = por %p55, %p56
      %p59 = scmp.ne.s32.totalorder %s42, %s58
      %p60 = scmp.eq.s32.totalorder %s22, 0
      %p61 = por %p59, %p60
      %s62 = ssub.s32 %s23, %s35
      %p63 = scmp.eq.s32.totalorder %s62, 0
      %s65 = sadd.s32 %s64, 1
      %s66 = scalar_select %p63, %s64, %s65
      %p69 = pneg %p63
      %p70 = scmp.eq.s32.totalorder %s16, 1
      %p71 = por %p69, %p70
      %p72 = scmp.ne.s32.totalorder %s64, %s67
      %p73 = scmp.eq.s32.totalorder %s16, 0
      %p74 = por %p72, %p73
      %p75 = scmp.ne.s32.totalorder %s64, %s67
      %p76 = scmp.eq.s32.totalorder %s21, 1
      %p77 = por %p75, %p76
      %p78 = scmp.ne.s32.totalorder %s67, %s68
      %p79 = scmp.eq.s32.totalorder %s21, 0
      %p80 = por %p78, %p79
      %p81 = scmp.ne.s32.totalorder %s67, %s68
      %p82 = scmp.eq.s32.totalorder %s22, 1
      %p83 = por %p81, %p82
      %p85 = scmp.ne.s32.totalorder %s68, %s84
      %p86 = scmp.eq.s32.totalorder %s22, 0
      %p87 = por %p85, %p86
      %s88 = ssub.s32 %s23, %s35
      %p89 = scmp.eq.s32.totalorder %s88, 0
      %s91 = sadd.s32 %s90, 1
      %s92 = scalar_select %p89, %s90, %s91
      %p95 = pneg %p89
      %p96 = scmp.eq.s32.totalorder %s16, 1
      %p97 = por %p95, %p96
      %p98 = scmp.ne.s32.totalorder %s90, %s93
      %p99 = scmp.eq.s32.totalorder %s16, 0
      %p100 = por %p98, %p99
      %p101 = scmp.ne.s32.totalorder %s90, %s93
      %p102 = scmp.eq.s32.totalorder %s21, 1
      %p103 = por %p101, %p102
      %p104 = scmp.ne.s32.totalorder %s93, %s94
      %p105 = scmp.eq.s32.totalorder %s21, 0
      %p106 = por %p104, %p105
      %p107 = scmp.ne.s32.totalorder %s93, %s94
      %p108 = scmp.eq.s32.totalorder %s22, 1
      %p109 = por %p107, %p108
      %p111 = scmp.ne.s32.totalorder %s94, %s110
      %p112 = scmp.eq.s32.totalorder %s22, 0
      %p113 = por %p111, %p112
      %s114 = ssub.s32 %s24, %s31
      %s115 = ssub.s32 %s23, %s35
      %s116 = sor.u32 %s114, %s115
      %p117 = scmp.eq.s32.totalorder %s116, 0
      %s119 = sadd.s32 %s118, 1
      %s120 = scalar_select %p117, %s118, %s119
      %p123 = pneg %p117
      %p124 = scmp.eq.s32.totalorder %s16, 1
      %p125 = por %p123, %p124
      %p126 = scmp.ne.s32.totalorder %s118, %s121
      %p127 = scmp.eq.s32.totalorder %s16, 0
      %p128 = por %p126, %p127
      %p129 = scmp.ne.s32.totalorder %s118, %s121
      %p130 = scmp.eq.s32.totalorder %s21, 1
      %p131 = por %p129, %p130
      %p132 = scmp.ne.s32.totalorder %s121, %s122
      %p133 = scmp.eq.s32.totalorder %s21, 0
      %p134 = por %p132, %p133
      %p135 = scmp.ne.s32.totalorder %s121, %s122
      %p136 = scmp.eq.s32.totalorder %s22, 1
      %p137 = por %p135, %p136
      %p139 = scmp.ne.s32.totalorder %s122, %s138
      %p140 = scmp.eq.s32.totalorder %s22, 0
      %p141 = por %p139, %p140
      %p142 = scmp.le.s32.totalorder 1, %s16
      %p143 = scmp.lt.s32.totalorder %s16, 3
      %p144 = pnand %p142, %p143
      %p145 = pneg %p144
      // Predicated region
      $region9: #{tpu_custom_call.1} parent=5 // pred_check
        _
      $region10: #{tpu_custom_call.1} parent=5 // pred_check_branch
        %147 = sbr.rel (%p144) target = $region12
      $region11: #{tpu_custom_call.1} parent=5 // pred_region
        %s148 = ssub.s32 %s16, 1
        // Predicated region
        $region13: #{tpu_custom_call.1} parent=11 // pred_check
          %p149 = pneg %p80
        $region14: #{tpu_custom_call.1} parent=11 // pred_check_branch
          %151 = sbr.rel (%p149) target = $region16
        $region15: #{tpu_custom_call.1} parent=11 // pred_region
          %s153 = ssub.s32 9216, 9216
          %154 = vsyncadd [#allocation6], %s153
          %s155 = smul.addr %s25, 64
          %s156 = scalar_lea.hbm %s1, %s155
          %s157 = sshll.u32 [#allocation5], 4
          %s158 = int_to_ptr.vmem [resolvable:$true] %s157
          %163 = dma.hbm_to_vmem [thread:$0]  %s156, 9216, %s158, [#allocation6], 64, 64, 4
        $region16: #{tpu_custom_call.1} parent=11 // pred_fallthru
          _
        // Predicated region
        $region17: #{tpu_custom_call.1} parent=11 // pred_check
          %p164 = pneg %p106
        $region18: #{tpu_custom_call.1} parent=11 // pred_check_branch
          %166 = sbr.rel (%p164) target = $region20
        $region19: #{tpu_custom_call.1} parent=11 // pred_region
          %p167 = scmp.lt.s32.totalorder %s25, 0
          %s168 = scalar_select %p167, %s25, 0
          %s169 = scalar_lea.vmem %s2, %s168
        $region20: #{tpu_custom_call.1} parent=11 // pred_fallthru
          _
      $region12: #{tpu_custom_call.1} parent=5 // pred_fallthru
        _
      %p170 = scmp.lt.s32.totalorder %s16, 2
      // Predicated region
      $region21: #{tpu_custom_call.1} parent=5 // pred_check
        %p171 = pneg %p170
      $region22: #{tpu_custom_call.1} parent=5 // pred_check_branch
        %173 = sbr.rel (%p171) target = $region24
      $region23: #{tpu_custom_call.1} parent=5 // pred_region
        // Predicated region
        $region25: #{tpu_custom_call.1} parent=23 // pred_check
          %p174 = pneg %p48
        $region26: #{tpu_custom_call.1} parent=23 // pred_check_branch
          %176 = sbr.rel (%p174) target = $region28
        $region27: #{tpu_custom_call.1} parent=23 // pred_region
          %s177 = sand.u32 %s38, 1
          %s178 = scalar_lea.sflag [#allocation3], %s177
          %s179 = sand.u32 %s38, 1
          %s180 = smul.addr %s179, 288
          %s181 = scalar_lea.vmem [#allocation2], %s180
          %s183 = ssub.s32 4608, 4608
          %184 = vsyncadd %s178, %s183
          %s185 = smul.addr %s24, 72
          %s186 = smul.addr %s185, 64
          %s187 = scalar_lea.hbm %s0, %s186
          %s188 = sshll.u32 %s181, 4
          %s189 = int_to_ptr.vmem [resolvable:$true] %s188
          %194 = dma.hbm_to_vmem [thread:$0]  %s187, 4608, %s189, %s178, 192, 192, 12
        $region28: #{tpu_custom_call.1} parent=23 // pred_fallthru
          _
      $region24: #{tpu_custom_call.1} parent=5 // pred_fallthru
        _
      %p195 = scmp.le.s32.totalorder 1, %s16
      %p196 = scmp.lt.s32.totalorder %s16, 3
      %p197 = pnand %p195, %p196
      %p198 = pneg %p197
      // Predicated region
      $region29: #{tpu_custom_call.1} parent=5 // pred_check
        _
      $region30: #{tpu_custom_call.1} parent=5 // pred_check_branch
        %200 = sbr.rel (%p197) target = $region32
      $region31: #{tpu_custom_call.1} parent=5 // pred_region
        %s201 = ssub.s32 %s16, 1
        %s202 = sand.u32 %s41, 1
        %s203 = scalar_lea.sflag [#allocation3], %s202
        %s204 = sand.u32 %s41, 1
        %s205 = smul.addr %s204, 288
        %s206 = scalar_lea.vmem [#allocation2], %s205
        // Predicated region
        $region33: #{tpu_custom_call.1} parent=31 // pred_check
          %p207 = pneg %p54
        $region34: #{tpu_custom_call.1} parent=31 // pred_check_branch
          %209 = sbr.rel (%p207) target = $region36
        $region35: #{tpu_custom_call.1} parent=31 // pred_region
          %210 = dma.done %s203, 4608
        $region36: #{tpu_custom_call.1} parent=31 // pred_fallthru
          _
        // Predicated region
        $region37: #{tpu_custom_call.1} parent=31 // pred_check
          %p211 = pneg %p80
        $region38: #{tpu_custom_call.1} parent=31 // pred_check_branch
          %213 = sbr.rel (%p211) target = $region40
        $region39: #{tpu_custom_call.1} parent=31 // pred_region
          %214 = dma.done [#allocation6], 9216
        $region40: #{tpu_custom_call.1} parent=31 // pred_fallthru
          _
        %s215 = sand.u32 %s41, 1
        %s216 = scalar_lea.sflag [#allocation3], %s215
        %s217 = sand.u32 %s41, 1
        %s218 = smul.addr %s217, 288
        %s219 = scalar_lea.vmem [#allocation2], %s218
        %p220 = pneg %p54
        %p221 = pneg %p51
        %p222 = pneg %p80
        %p223 = pneg %p77
        %p224 = scmp.lt.s32.totalorder %s25, 0
        %s225 = scalar_select %p224, %s25, 0
        %s226 = scalar_lea.vmem %s2, %s225
        %p227 = pneg %p106
        %p228 = pneg %p103
        %p229 = pneg %p134
        %p230 = pneg %p131
        %s231 = sand.u32 %s121, 1
        %s232 = scalar_lea.sflag [#allocation4], %s231
        %s233 = sand.u32 %s121, 1
        %s234 = smul.addr %s233, 64
        %s235 = scalar_lea.vmem [#allocation7], %s234
        %p236 = scmp.lt.s32.totalorder %s25, 0
        %s237 = scalar_select %p236, %s25, 0
        %s238 = scalar_lea.vmem %s2, %s237
        %v240 = vld [vmem:[%s206] sm:$0xff]
        %v241 = vld [vmem:[%s206 + $0x8] sm:$0xf]
        %v242 = vld [vmem:[%s206 + $0xc] sm:$0xff]
        %v243 = vld [vmem:[%s206 + $0x14] sm:$0xf]
        %v244 = vld [vmem:[%s206 + $0x18] sm:$0xff]
        %v245 = vld [vmem:[%s206 + $0x20] sm:$0xf]
        %v246 = vld [vmem:[%s206 + $0x24] sm:$0xff]
        %v247 = vld [vmem:[%s206 + $0x2c] sm:$0xf]
        %v248 = vld [vmem:[%s206 + $0x30] sm:$0xff]
        %v249 = vld [vmem:[%s206 + $0x38] sm:$0xf]
        %v250 = vld [vmem:[%s206 + $0x3c] sm:$0xff]
        %v251 = vld [vmem:[%s206 + $0x44] sm:$0xf]
        %v252 = vld [vmem:[%s206 + $0x48] sm:$0xff]
        %v253 = vld [vmem:[%s206 + $0x50] sm:$0xf]
        %v254 = vld [vmem:[%s206 + $0x54] sm:$0xff]
        %v255 = vld [vmem:[%s206 + $0x5c] sm:$0xf]
        %v256 = vld [vmem:[%s206 + $0x60] sm:$0xff]
        %v257 = vld [vmem:[%s206 + $0x68] sm:$0xf]
        %v258 = vld [vmem:[%s206 + $0x6c] sm:$0xff]
        %v259 = vld [vmem:[%s206 + $0x74] sm:$0xf]
        %v260 = vld [vmem:[%s206 + $0x78] sm:$0xff]
        %v261 = vld [vmem:[%s206 + $0x80] sm:$0xf]
        %v262 = vld [vmem:[%s206 + $0x84] sm:$0xff]
        %v263 = vld [vmem:[%s206 + $0x8c] sm:$0xf]
        %v264 = vld [vmem:[%s206 + $0x90] sm:$0xff]
        %v265 = vld [vmem:[%s206 + $0x98] sm:$0xf]
        %v266 = vld [vmem:[%s206 + $0x9c] sm:$0xff]
        %v267 = vld [vmem:[%s206 + $0xa4] sm:$0xf]
        %v268 = vld [vmem:[%s206 + $0xa8] sm:$0xff]
        %v269 = vld [vmem:[%s206 + $0xb0] sm:$0xf]
        %v270 = vld [vmem:[%s206 + $0xb4] sm:$0xff]
        %v271 = vld [vmem:[%s206 + $0xbc] sm:$0xf]
        %v272 = vld [vmem:[#allocation5] sm:$0xf]
        %v273 = vld [vmem:[#allocation5 + $0x4] sm:$0xf]
        %v274 = vld [vmem:[#allocation5 + $0x8] sm:$0xf]
        %v275 = vld [vmem:[#allocation5 + $0xc] sm:$0xf]
        %v276 = vld [vmem:[#allocation5 + $0x10] sm:$0xf]
        %v277 = vld [vmem:[#allocation5 + $0x14] sm:$0xf]
        %v278 = vld [vmem:[#allocation5 + $0x18] sm:$0xf]
        %v279 = vld [vmem:[#allocation5 + $0x1c] sm:$0xf]
        %v280 = vld [vmem:[#allocation5 + $0x20] sm:$0xf]
        %v281 = vld [vmem:[#allocation5 + $0x24] sm:$0xf]
        %v282 = vld [vmem:[#allocation5 + $0x28] sm:$0xf]
        %v283 = vld [vmem:[#allocation5 + $0x2c] sm:$0xf]
        %v284 = vld [vmem:[#allocation5 + $0x30] sm:$0xf]
        %v285 = vld [vmem:[#allocation5 + $0x34] sm:$0xf]
        %v286 = vld [vmem:[#allocation5 + $0x38] sm:$0xf]
        %v287 = vld [vmem:[#allocation5 + $0x3c] sm:$0xf]
        %v288 = vld [vmem:[#allocation5 + $0x40] sm:$0xf]
        %v289 = vld [vmem:[#allocation5 + $0x44] sm:$0xf]
        %v290 = vld [vmem:[#allocation5 + $0x48] sm:$0xf]
        %v291 = vld [vmem:[#allocation5 + $0x4c] sm:$0xf]
        %v292 = vld [vmem:[#allocation5 + $0x50] sm:$0xf]
        %v293 = vld [vmem:[#allocation5 + $0x54] sm:$0xf]
        %v294 = vld [vmem:[#allocation5 + $0x58] sm:$0xf]
        %v295 = vld [vmem:[#allocation5 + $0x5c] sm:$0xf]
        %v296 = vld [vmem:[#allocation5 + $0x60] sm:$0xf]
        %v297 = vld [vmem:[#allocation5 + $0x64] sm:$0xf]
        %v298 = vld [vmem:[#allocation5 + $0x68] sm:$0xf]
        %v299 = vld [vmem:[#allocation5 + $0x6c] sm:$0xf]
        %v300 = vld [vmem:[#allocation5 + $0x70] sm:$0xf]
        %v301 = vld [vmem:[#allocation5 + $0x74] sm:$0xf]
        %v302 = vld [vmem:[#allocation5 + $0x78] sm:$0xf]
        %v303 = vld [vmem:[#allocation5 + $0x7c] sm:$0xf]
        %v304 = vld [vmem:[#allocation5 + $0x80] sm:$0xf]
        %v305 = vld [vmem:[#allocation5 + $0x84] sm:$0xf]
        %v306 = vld [vmem:[#allocation5 + $0x88] sm:$0xf]
        %v307 = vld [vmem:[#allocation5 + $0x8c] sm:$0xf]
        %v308 = vld [vmem:[#allocation5 + $0x90] sm:$0xf]
        %v309 = vld [vmem:[#allocation5 + $0x94] sm:$0xf]
        %v310 = vld [vmem:[#allocation5 + $0x98] sm:$0xf]
        %v311 = vld [vmem:[#allocation5 + $0x9c] sm:$0xf]
        %v312 = vld [vmem:[#allocation5 + $0xa0] sm:$0xf]
        %v313 = vld [vmem:[#allocation5 + $0xa4] sm:$0xf]
        %v314 = vld [vmem:[#allocation5 + $0xa8] sm:$0xf]
        %v315 = vld [vmem:[#allocation5 + $0xac] sm:$0xf]
        %v316 = vld [vmem:[#allocation5 + $0xb0] sm:$0xf]
        %v317 = vld [vmem:[#allocation5 + $0xb4] sm:$0xf]
        %v318 = vld [vmem:[#allocation5 + $0xb8] sm:$0xf]
        %v319 = vld [vmem:[#allocation5 + $0xbc] sm:$0xf]
        %v320 = vld [vmem:[%s206 + $0xc0] sm:$0xff]
        %v321 = vld [vmem:[%s206 + $0xc8] sm:$0xf]
        %v322 = vld [vmem:[%s206 + $0xcc] sm:$0xff]
        %v323 = vld [vmem:[%s206 + $0xd4] sm:$0xf]
        %v324 = vld [vmem:[%s206 + $0xd8] sm:$0xff]
        %v325 = vld [vmem:[%s206 + $0xe0] sm:$0xf]
        %v326 = vld [vmem:[%s206 + $0xe4] sm:$0xff]
        %v327 = vld [vmem:[%s206 + $0xec] sm:$0xf]
        %s328 = scalar_lea.vmem [#allocation5], 192
        %v329 = vld [vmem:[%s328] sm:$0xf]
        %v330 = vld [vmem:[%s328 + $0x4] sm:$0xf]
        %v331 = vld [vmem:[%s328 + $0x8] sm:$0xf]
        %v332 = vld [vmem:[%s328 + $0xc] sm:$0xf]
        %v333 = vld [vmem:[%s328 + $0x10] sm:$0xf]
        %v334 = vld [vmem:[%s328 + $0x14] sm:$0xf]
        %v335 = vld [vmem:[%s328 + $0x18] sm:$0xf]
        %v336 = vld [vmem:[%s328 + $0x1c] sm:$0xf]
        %v337 = vld [vmem:[%s328 + $0x20] sm:$0xf]
        %v338 = vld [vmem:[%s328 + $0x24] sm:$0xf]
        %v339 = vld [vmem:[%s328 + $0x28] sm:$0xf]
        %v340 = vld [vmem:[%s328 + $0x2c] sm:$0xf]
        %v341 = vld [vmem:[%s328 + $0x30] sm:$0xf]
        %v342 = vld [vmem:[%s328 + $0x34] sm:$0xf]
        %v343 = vld [vmem:[%s328 + $0x38] sm:$0xf]
        %v344 = vld [vmem:[%s328 + $0x3c] sm:$0xf]
        %v345 = vld [vmem:[%s328 + $0x40] sm:$0xf]
        %v346 = vld [vmem:[%s328 + $0x44] sm:$0xf]
        %v347 = vld [vmem:[%s328 + $0x48] sm:$0xf]
        %v348 = vld [vmem:[%s328 + $0x4c] sm:$0xf]
        %v349 = vld [vmem:[%s328 + $0x50] sm:$0xf]
        %v350 = vld [vmem:[%s328 + $0x54] sm:$0xf]
        %v351 = vld [vmem:[%s328 + $0x58] sm:$0xf]
        %v352 = vld [vmem:[%s328 + $0x5c] sm:$0xf]
        %v353 = vld [vmem:[%s328 + $0x60] sm:$0xf]
        %v354 = vld [vmem:[%s328 + $0x64] sm:$0xf]
        %v355 = vld [vmem:[%s328 + $0x68] sm:$0xf]
        %v356 = vld [vmem:[%s328 + $0x6c] sm:$0xf]
        %v357 = vld [vmem:[%s328 + $0x70] sm:$0xf]
        %v358 = vld [vmem:[%s328 + $0x74] sm:$0xf]
        %v359 = vld [vmem:[%s328 + $0x78] sm:$0xf]
        %v360 = vld [vmem:[%s328 + $0x7c] sm:$0xf]
        %v361 = vld [vmem:[%s328 + $0x80] sm:$0xf]
        %v362 = vld [vmem:[%s328 + $0x84] sm:$0xf]
        %v363 = vld [vmem:[%s328 + $0x88] sm:$0xf]
        %v364 = vld [vmem:[%s328 + $0x8c] sm:$0xf]
        %v365 = vld [vmem:[%s328 + $0x90] sm:$0xf]
        %v366 = vld [vmem:[%s328 + $0x94] sm:$0xf]
        %v367 = vld [vmem:[%s328 + $0x98] sm:$0xf]
        %v368 = vld [vmem:[%s328 + $0x9c] sm:$0xf]
        %v369 = vld [vmem:[%s328 + $0xa0] sm:$0xf]
        %v370 = vld [vmem:[%s328 + $0xa4] sm:$0xf]
        %v371 = vld [vmem:[%s328 + $0xa8] sm:$0xf]
        %v372 = vld [vmem:[%s328 + $0xac] sm:$0xf]
        %v373 = vld [vmem:[%s328 + $0xb0] sm:$0xf]
        %v374 = vld [vmem:[%s328 + $0xb4] sm:$0xf]
        %v375 = vld [vmem:[%s328 + $0xb8] sm:$0xf]
        %v376 = vld [vmem:[%s328 + $0xbc] sm:$0xf]
        %v409 = vunpack.c.l.b16 %v248
        %v410 = vunpack.c.h.b16 %v248
        %v411 = vunpack.c.l.b16 %v249
        %v412 = vunpack.c.l.b16 %v250
        %v413 = vunpack.c.h.b16 %v250
        %v414 = vunpack.c.l.b16 %v251
        %v415 = vunpack.c.l.b16 %v252
        %v416 = vunpack.c.h.b16 %v252
        %v417 = vunpack.c.l.b16 %v253
        %v418 = vunpack.c.l.b16 %v254
        %v419 = vunpack.c.h.b16 %v254
        %v420 = vunpack.c.l.b16 %v255
        %v421 = vunpack.c.l.b16 %v256
        %v422 = vunpack.c.h.b16 %v256
        %v423 = vunpack.c.l.b16 %v257
        %v424 = vunpack.c.l.b16 %v258
        %v425 = vunpack.c.h.b16 %v258
        %v426 = vunpack.c.l.b16 %v259
        %v427 = vunpack.c.l.b16 %v260
        %v428 = vunpack.c.h.b16 %v260
        %v429 = vunpack.c.l.b16 %v261
        %v430 = vunpack.c.l.b16 %v262
        %v431 = vunpack.c.h.b16 %v262
        %v432 = vunpack.c.l.b16 %v263
        %v433 = vunpack.c.l.b16 %v264
        %v434 = vunpack.c.h.b16 %v264
        %v435 = vunpack.c.l.b16 %v265
        %v436 = vunpack.c.l.b16 %v266
        %v437 = vunpack.c.h.b16 %v266
        %v438 = vunpack.c.l.b16 %v267
        %v439 = vunpack.c.l.b16 %v268
        %v440 = vunpack.c.h.b16 %v268
        %v441 = vunpack.c.l.b16 %v269
        %v442 = vunpack.c.l.b16 %v270
        %v443 = vunpack.c.h.b16 %v270
        %v444 = vunpack.c.l.b16 %v271
        %v445 = vunpack.c.l.b16 %v320
        %v446 = vunpack.c.h.b16 %v320
        %v447 = vunpack.c.l.b16 %v321
        %v448 = vunpack.c.l.b16 %v322
        %v449 = vunpack.c.h.b16 %v322
        %v450 = vunpack.c.l.b16 %v323
        %v451 = vunpack.c.l.b16 %v324
        %v452 = vunpack.c.h.b16 %v324
        %v453 = vunpack.c.l.b16 %v325
        %v454 = vunpack.c.l.b16 %v326
        %v455 = vunpack.c.h.b16 %v326
        %v456 = vunpack.c.l.b16 %v327
        %v457 = vpack.c.b16 %v412, %v409
        %v458 = vpack.c.b16 %v413, %v410
        %v459 = vpack.c.b16 %v414, %v411
        %v460 = vpack.c.b16 %v418, %v415
        %v461 = vpack.c.b16 %v419, %v416
        %v462 = vpack.c.b16 %v420, %v417
        %v463 = vpack.c.b16 %v424, %v421
        %v464 = vpack.c.b16 %v425, %v422
        %v465 = vpack.c.b16 %v426, %v423
        %v466 = vpack.c.b16 %v430, %v427
        %v467 = vpack.c.b16 %v431, %v428
        %v468 = vpack.c.b16 %v432, %v429
        %v469 = vpack.c.b16 %v436, %v433
        %v470 = vpack.c.b16 %v437, %v434
        %v471 = vpack.c.b16 %v438, %v435
        %v472 = vpack.c.b16 %v442, %v439
        %v473 = vpack.c.b16 %v443, %v440
        %v474 = vpack.c.b16 %v444, %v441
        %v475 = vpack.c.b16 %v448, %v445
        %v476 = vpack.c.b16 %v449, %v446
        %v477 = vpack.c.b16 %v450, %v447
        %v478 = vpack.c.b16 %v454, %v451
        %v479 = vpack.c.b16 %v455, %v452
        %v480 = vpack.c.b16 %v456, %v453
        %v553 = vunpack.c.l.b16 %v329
        %v554 = vunpack.c.l.b16 %v330
        %v555 = vunpack.c.l.b16 %v331
        %v556 = vunpack.c.l.b16 %v332
        %v557 = vunpack.c.l.b16 %v333
        %v558 = vunpack.c.l.b16 %v334
        %v559 = vunpack.c.l.b16 %v335
        %v560 = vunpack.c.l.b16 %v336
        %v561 = vunpack.c.l.b16 %v337
        %v562 = vunpack.c.l.b16 %v338
        %v563 = vunpack.c.l.b16 %v339
        %v564 = vunpack.c.l.b16 %v340
        %v565 = vunpack.c.l.b16 %v341
        %v566 = vunpack.c.l.b16 %v342
        %v567 = vunpack.c.l.b16 %v343
        %v568 = vunpack.c.l.b16 %v344
        %v569 = vunpack.c.l.b16 %v345
        %v570 = vunpack.c.l.b16 %v346
        %v571 = vunpack.c.l.b16 %v347
        %v572 = vunpack.c.l.b16 %v348
        %v573 = vunpack.c.l.b16 %v349
        %v574 = vunpack.c.l.b16 %v350
        %v575 = vunpack.c.l.b16 %v351
        %v576 = vunpack.c.l.b16 %v352
        %v577 = vunpack.c.l.b16 %v353
        %v578 = vunpack.c.l.b16 %v354
        %v579 = vunpack.c.l.b16 %v355
        %v580 = vunpack.c.l.b16 %v356
        %v581 = vunpack.c.l.b16 %v357
        %v582 = vunpack.c.l.b16 %v358
        %v583 = vunpack.c.l.b16 %v359
        %v584 = vunpack.c.l.b16 %v360
        %v585 = vunpack.c.l.b16 %v361
        %v586 = vunpack.c.l.b16 %v362
        %v587 = vunpack.c.l.b16 %v363
        %v588 = vunpack.c.l.b16 %v364
        %v589 = vunpack.c.l.b16 %v365
        %v590 = vunpack.c.l.b16 %v366
        %v591 = vunpack.c.l.b16 %v367
        %v592 = vunpack.c.l.b16 %v368
        %v593 = vunpack.c.l.b16 %v369
        %v594 = vunpack.c.l.b16 %v370
        %v595 = vunpack.c.l.b16 %v371
        %v596 = vunpack.c.l.b16 %v372
        %v597 = vunpack.c.l.b16 %v373
        %v598 = vunpack.c.l.b16 %v374
        %v599 = vunpack.c.l.b16 %v375
        %v600 = vunpack.c.l.b16 %v376
        %v601 = vpack.c.b16 %v554, %v553
        %v602 = vpack.c.b16 %v556, %v555
        %v603 = vpack.c.b16 %v558, %v557
        %v604 = vpack.c.b16 %v560, %v559
        %v605 = vpack.c.b16 %v562, %v561
        %v606 = vpack.c.b16 %v564, %v563
        %v607 = vpack.c.b16 %v566, %v565
        %v608 = vpack.c.b16 %v568, %v567
        %v609 = vpack.c.b16 %v570, %v569
        %v610 = vpack.c.b16 %v572, %v571
        %v611 = vpack.c.b16 %v574, %v573
        %v612 = vpack.c.b16 %v576, %v575
        %v613 = vpack.c.b16 %v578, %v577
        %v614 = vpack.c.b16 %v580, %v579
        %v615 = vpack.c.b16 %v582, %v581
        %v616 = vpack.c.b16 %v584, %v583
        %v617 = vpack.c.b16 %v586, %v585
        %v618 = vpack.c.b16 %v588, %v587
        %v619 = vpack.c.b16 %v590, %v589
        %v620 = vpack.c.b16 %v592, %v591
        %v621 = vpack.c.b16 %v594, %v593
        %v622 = vpack.c.b16 %v596, %v595
        %v623 = vpack.c.b16 %v598, %v597
        %v624 = vpack.c.b16 %v600, %v599
        %649 = vmatprep.subr.bf16.mxu0 0
        %650 = vmatpush1.bf16.msra.mxu0 %v601
        %651 = vmatprep.subr.bf16.mxu0 0
        %652 = vmatpush1.bf16.msra.mxu0 %v602
        %653 = vmatprep.subr.bf16.mxu0 0
        %654 = vmatpush1.bf16.msra.mxu0 %v603
        %655 = vmatprep.subr.bf16.mxu0 0
        %656 = vmatpush1.bf16.msra.mxu0 %v604
        %657 = vmatprep.subr.bf16.mxu0 0
        %658 = vmatpush1.bf16.msra.mxu0 %v605
        %659 = vmatprep.subr.bf16.mxu0 0
        %660 = vmatpush1.bf16.msra.mxu0 %v606
        %661 = vmatprep.subr.bf16.mxu0 0
        %662 = vmatpush1.bf16.msra.mxu0 %v607
        %663 = vmatprep.subr.bf16.mxu0 0
        %664 = vmatpush1.bf16.msra.mxu0 %v608
        %665 = vmatprep.subr.bf16.mxu0 0
        %666 = vmatpush1.bf16.msra.mxu0 %v609
        %667 = vmatprep.subr.bf16.mxu0 0
        %668 = vmatpush1.bf16.msra.mxu0 %v610
        %669 = vmatprep.subr.bf16.mxu0 0
        %670 = vmatpush1.bf16.msra.mxu0 %v611
        %671 = vmatprep.subr.bf16.mxu0 0
        %672 = vmatpush1.bf16.msra.mxu0 %v612
        %673 = vmatprep.subr.bf16.mxu0 0
        %674 = vmatpush1.bf16.msra.mxu0 %v613
        %675 = vmatprep.subr.bf16.mxu0 0
        %676 = vmatpush1.bf16.msra.mxu0 %v614
        %677 = vmatprep.subr.bf16.mxu0 0
        %678 = vmatpush1.bf16.msra.mxu0 %v615
        %679 = vmatprep.subr.bf16.mxu0 0
        %680 = vmatpush1.bf16.msra.mxu0 %v616
        %681 = vmatprep.mubr.bf16.mxu0 %v458
        %682 = vmatmul.mubr.bf16.gmra.mrb[0].mxu0 %v457
        %v683 = vpop.f32.mrb[0].mxu0
        %v684 = vadd.f32 0.0, %v683
        %v685 = vpop.f32.mrb[0].mxu0
        %v686 = vpop.f32.mrb[0].mxu0
        %v687 = vadd.f32 0.0, %v686
        %v688 = vpop.f32.mrb[0].mxu0
        %689 = vmatprep.mubr.bf16.mxu0 %v461
        %690 = vmatmul.mubr.bf16.gmra.mrb[0].mxu0 %v460
        %v691 = vpop.f32.mrb[0].mxu0
        %v692 = vadd.f32 0.0, %v691
        %v693 = vpop.f32.mrb[0].mxu0
        %v694 = vpop.f32.mrb[0].mxu0
        %v695 = vadd.f32 0.0, %v694
        %v696 = vpop.f32.mrb[0].mxu0
        %697 = vmatprep.mubr.bf16.mxu0 %v464
        %698 = vmatmul.mubr.bf16.gmra.mrb[0].mxu0 %v463
        %v699 = vpop.f32.mrb[0].mxu0
        %v700 = vadd.f32 0.0, %v699
        %v701 = vpop.f32.mrb[0].mxu0
        %v702 = vpop.f32.mrb[0].mxu0
        %v703 = vadd.f32 0.0, %v702
        %v704 = vpop.f32.mrb[0].mxu0
        %705 = vmatprep.mubr.bf16.mxu0 %v467
        %706 = vmatmul.mubr.bf16.gmra.mrb[0].mxu0 %v466
        %v707 = vpop.f32.mrb[0].mxu0
        %v708 = vadd.f32 0.0, %v707
        %v709 = vpop.f32.mrb[0].mxu0
        %v710 = vpop.f32.mrb[0].mxu0
        %v711 = vadd.f32 0.0, %v710
        %v712 = vpop.f32.mrb[0].mxu0
        %713 = vmatprep.mubr.bf16.mxu0 %v470
        %714 = vmatmul.mubr.bf16.gmra.mrb[0].mxu0 %v469
        %v715 = vpop.f32.mrb[0].mxu0
        %v716 = vadd.f32 0.0, %v715
        %v717 = vpop.f32.mrb[0].mxu0
        %v718 = vpop.f32.mrb[0].mxu0
        %v719 = vadd.f32 0.0, %v718
        %v720 = vpop.f32.mrb[0].mxu0
        %721 = vmatprep.mubr.bf16.mxu0 %v473
        %722 = vmatmul.mubr.bf16.gmra.mrb[0].mxu0 %v472
        %v723 = vpop.f32.mrb[0].mxu0
        %v724 = vadd.f32 0.0, %v723
        %v725 = vpop.f32.mrb[0].mxu0
        %v726 = vpop.f32.mrb[0].mxu0
        %v727 = vadd.f32 0.0, %v726
        %v728 = vpop.f32.mrb[0].mxu0
        %729 = vmatprep.mubr.bf16.mxu0 %v476
        %730 = vmatmul.mubr.bf16.gmra.mrb[0].mxu0 %v475
        %v731 = vpop.f32.mrb[0].mxu0
        %v732 = vadd.f32 0.0, %v731
        %v733 = vpop.f32.mrb[0].mxu0
        %v734 = vpop.f32.mrb[0].mxu0
        %v735 = vadd.f32 0.0, %v734
        %v736 = vpop.f32.mrb[0].mxu0
        %737 = vmatprep.mubr.bf16.mxu0 %v479
        %738 = vmatmul.mubr.bf16.gmra.mrb[0].mxu0 %v478
        %v739 = vpop.f32.mrb[0].mxu0
        %v740 = vadd.f32 0.0, %v739
        %v741 = vpop.f32.mrb[0].mxu0
        %v742 = vpop.f32.mrb[0].mxu0
        %v743 = vadd.f32 0.0, %v742
        %v744 = vpop.f32.mrb[0].mxu0
        %745 = vdwg.mxu0
        %746 = vmatprep.subr.bf16.mxu0 0
        %747 = vmatpush1.bf16.msra.mxu0 %v617
        %748 = vmatprep.subr.bf16.mxu0 0
        %749 = vmatpush1.bf16.msra.mxu0 %v618
        %750 = vmatprep.subr.bf16.mxu0 0
        %751 = vmatpush1.bf16.msra.mxu0 %v619
        %752 = vmatprep.subr.bf16.mxu0 0
        %753 = vmatpush1.bf16.msra.mxu0 %v620
        %754 = vmatprep.subr.bf16.mxu0 0
        %755 = vmatpush1.bf16.msra.mxu0 %v621
        %756 = vmatprep.subr.bf16.mxu0 0
        %757 = vmatpush1.bf16.msra.mxu0 %v622
        %758 = vmatprep.subr.bf16.mxu0 0
        %759 = vmatpush1.bf16.msra.mxu0 %v623
        %760 = vmatprep.subr.bf16.mxu0 0
        %761 = vmatpush1.bf16.msra.mxu0 %v624
        %762 = vmatprep.subr.bf16.mxu0 0
        %763 = vmatpush1.bf16.msra.mxu0 0
        %764 = vmatprep.subr.bf16.mxu0 0
        %765 = vmatpush1.bf16.msra.mxu0 0
        %766 = vmatprep.subr.bf16.mxu0 0
        %767 = vmatpush1.bf16.msra.mxu0 0
        %768 = vmatprep.subr.bf16.mxu0 0
        %769 = vmatpush1.bf16.msra.mxu0 0
        %770 = vmatprep.subr.bf16.mxu0 0
        %771 = vmatpush1.bf16.msra.mxu0 0
        %772 = vmatprep.subr.bf16.mxu0 0
        %773 = vmatpush1.bf16.msra.mxu0 0
        %774 = vmatprep.subr.bf16.mxu0 0
        %775 = vmatpush1.bf16.msra.mxu0 0
        %776 = vmatprep.subr.bf16.mxu0 0
        %777 = vmatpush1.bf16.msra.mxu0 0
        %778 = vmatprep.mubr.bf16.mxu0 0
        %779 = vmatmul.mubr.bf16.gmra.mrb[0].mxu0 %v459
        %v780 = vpop.f32.mrb[0].mxu0
        %v781 = vadd.f32 %v684, %v780
        %v782 = vpop.f32.mrb[0].mxu0
        %v783 = vpop.f32.mrb[0].mxu0
        %v784 = vadd.f32 %v687, %v783
        %v785 = vpop.f32.mrb[0].mxu0
        %786 = vmatprep.mubr.bf16.mxu0 0
        %787 = vmatmul.mubr.bf16.gmra.mrb[0].mxu0 %v462
        %v788 = vpop.f32.mrb[0].mxu0
        %v789 = vadd.f32 %v692, %v788
        %v790 = vpop.f32.mrb[0].mxu0
        %v791 = vpop.f32.mrb[0].mxu0
        %v792 = vadd.f32 %v695, %v791
        %v793 = vpop.f32.mrb[0].mxu0
        %794 = vmatprep.mubr.bf16.mxu0 0
        %795 = vmatmul.mubr.bf16.gmra.mrb[0].mxu0 %v465
        %v796 = vpop.f32.mrb[0].mxu0
        %v797 = vadd.f32 %v700, %v796
        %v798 = vpop.f32.mrb[0].mxu0
        %v799 = vpop.f32.mrb[0].mxu0
        %v800 = vadd.f32 %v703, %v799
        %v801 = vpop.f32.mrb[0].mxu0
        %802 = vmatprep.mubr.bf16.mxu0 0
        %803 = vmatmul.mubr.bf16.gmra.mrb[0].mxu0 %v468
        %v804 = vpop.f32.mrb[0].mxu0
        %v805 = vadd.f32 %v708, %v804
        %v806 = vpop.f32.mrb[0].mxu0
        %v807 = vpop.f32.mrb[0].mxu0
        %v808 = vadd.f32 %v711, %v807
        %v809 = vpop.f32.mrb[0].mxu0
        %810 = vmatprep.mubr.bf16.mxu0 0
        %811 = vmatmul.mubr.bf16.gmra.mrb[0].mxu0 %v471
        %v812 = vpop.f32.mrb[0].mxu0
        %v813 = vadd.f32 %v716, %v812
        %v814 = vpop.f32.mrb[0].mxu0
        %v815 = vpop.f32.mrb[0].mxu0
        %v816 = vadd.f32 %v719, %v815
        %v817 = vpop.f32.mrb[0].mxu0
        %818 = vmatprep.mubr.bf16.mxu0 0
        %819 = vmatmul.mubr.bf16.gmra.mrb[0].mxu0 %v474
        %v820 = vpop.f32.mrb[0].mxu0
        %v821 = vadd.f32 %v724, %v820
        %v822 = vpop.f32.mrb[0].mxu0
        %v823 = vpop.f32.mrb[0].mxu0
        %v824 = vadd.f32 %v727, %v823
        %v825 = vpop.f32.mrb[0].mxu0
        %826 = vmatprep.mubr.bf16.mxu0 0
        %827 = vmatmul.mubr.bf16.gmra.mrb[0].mxu0 %v477
        %v828 = vpop.f32.mrb[0].mxu0
        %v829 = vadd.f32 %v732, %v828
        %v830 = vpop.f32.mrb[0].mxu0
        %v831 = vpop.f32.mrb[0].mxu0
        %v832 = vadd.f32 %v735, %v831
        %v833 = vpop.f32.mrb[0].mxu0
        %834 = vmatprep.mubr.bf16.mxu0 0
        %835 = vmatmul.mubr.bf16.gmra.mrb[0].mxu0 %v480
        %v836 = vpop.f32.mrb[0].mxu0
        %v837 = vadd.f32 %v740, %v836
        %v838 = vpop.f32.mrb[0].mxu0
        %v839 = vpop.f32.mrb[0].mxu0
        %v840 = vadd.f32 %v743, %v839
        %v841 = vpop.f32.mrb[0].mxu0
        %842 = vdwg.mxu0
        %v851 = vunpack.c.l.b16 %v240
        %v852 = vunpack.c.h.b16 %v240
        %v853 = vunpack.c.l.b16 %v241
        %v854 = vunpack.c.l.b16 %v242
        %v855 = vunpack.c.h.b16 %v242
        %v856 = vunpack.c.l.b16 %v243
        %v857 = vunpack.c.l.b16 %v244
        %v858 = vunpack.c.h.b16 %v244
        %v859 = vunpack.c.l.b16 %v245
        %v860 = vunpack.c.l.b16 %v246
        %v861 = vunpack.c.h.b16 %v246
        %v862 = vunpack.c.l.b16 %v247
        %v863 = vpack.c.b16 %v854, %v851
        %v864 = vpack.c.b16 %v855, %v852
        %v865 = vpack.c.b16 %v856, %v853
        %v866 = vpack.c.b16 %v860, %v857
        %v867 = vpack.c.b16 %v861, %v858
        %v868 = vpack.c.b16 %v862, %v859
        %v923 = vunpack.c.l.b16 %v272
        %v924 = vunpack.c.l.b16 %v273
        %v925 = vunpack.c.l.b16 %v274
        %v926 = vunpack.c.l.b16 %v275
        %v927 = vunpack.c.l.b16 %v276
        %v928 = vunpack.c.l.b16 %v277
        %v929 = vunpack.c.l.b16 %v278
        %v930 = vunpack.c.l.b16 %v279
        %v931 = vunpack.c.l.b16 %v280
        %v932 = vunpack.c.l.b16 %v281
        %v933 = vunpack.c.l.b16 %v282
        %v934 = vunpack.c.l.b16 %v283
        %v935 = vunpack.c.l.b16 %v284
        %v936 = vunpack.c.l.b16 %v285
        %v937 = vunpack.c.l.b16 %v286
        %v938 = vunpack.c.l.b16 %v287
        %v939 = vunpack.c.l.b16 %v288
        %v940 = vunpack.c.l.b16 %v289
        %v941 = vunpack.c.l.b16 %v290
        %v942 = vunpack.c.l.b16 %v291
        %v943 = vunpack.c.l.b16 %v292
        %v944 = vunpack.c.l.b16 %v293
        %v945 = vunpack.c.l.b16 %v294
        %v946 = vunpack.c.l.b16 %v295
        %v947 = vunpack.c.l.b16 %v296
        %v948 = vunpack.c.l.b16 %v297
        %v949 = vunpack.c.l.b16 %v298
        %v950 = vunpack.c.l.b16 %v299
        %v951 = vunpack.c.l.b16 %v300
        %v952 = vunpack.c.l.b16 %v301
        %v953 = vunpack.c.l.b16 %v302
        %v954 = vunpack.c.l.b16 %v303
        %v955 = vunpack.c.l.b16 %v304
        %v956 = vunpack.c.l.b16 %v305
        %v957 = vunpack.c.l.b16 %v306
        %v958 = vunpack.c.l.b16 %v307
        %v959 = vunpack.c.l.b16 %v308
        %v960 = vunpack.c.l.b16 %v309
        %v961 = vunpack.c.l.b16 %v310
        %v962 = vunpack.c.l.b16 %v311
        %v963 = vunpack.c.l.b16 %v312
        %v964 = vunpack.c.l.b16 %v313
        %v965 = vunpack.c.l.b16 %v314
        %v966 = vunpack.c.l.b16 %v315
        %v967 = vunpack.c.l.b16 %v316
        %v968 = vunpack.c.l.b16 %v317
        %v969 = vunpack.c.l.b16 %v318
        %v970 = vunpack.c.l.b16 %v319
        %v971 = vpack.c.b16 %v924, %v923
        %v972 = vpack.c.b16 %v926, %v925
        %v973 = vpack.c.b16 %v928, %v927
        %v974 = vpack.c.b16 %v930, %v929
        %v975 = vpack.c.b16 %v932, %v931
        %v976 = vpack.c.b16 %v934, %v933
        %v977 = vpack.c.b16 %v936, %v935
        %v978 = vpack.c.b16 %v938, %v937
        %v979 = vpack.c.b16 %v940, %v939
        %v980 = vpack.c.b16 %v942, %v941
        %v981 = vpack.c.b16 %v944, %v943
        %v982 = vpack.c.b16 %v946, %v945
        %v983 = vpack.c.b16 %v948, %v947
        %v984 = vpack.c.b16 %v950, %v949
        %v985 = vpack.c.b16 %v952, %v951
        %v986 = vpack.c.b16 %v954, %v953
        %v987 = vpack.c.b16 %v956, %v955
        %v988 = vpack.c.b16 %v958, %v957
        %v989 = vpack.c.b16 %v960, %v959
        %v990 = vpack.c.b16 %v962, %v961
        %v991 = vpack.c.b16 %v964, %v963
        %v992 = vpack.c.b16 %v966, %v965
        %v993 = vpack.c.b16 %v968, %v967
        %v994 = vpack.c.b16 %v970, %v969
        %1019 = vmatprep.subr.bf16.mxu0 0
        %1020 = vmatpush1.bf16.msra.mxu0 %v971
        %1021 = vmatprep.subr.bf16.mxu0 0
        %1022 = vmatpush1.bf16.msra.mxu0 %v972
        %1023 = vmatprep.subr.bf16.mxu0 0
        %1024 = vmatpush1.bf16.msra.mxu0 %v973
        %1025 = vmatprep.subr.bf16.mxu0 0
        %1026 = vmatpush1.bf16.msra.mxu0 %v974
        %1027 = vmatprep.subr.bf16.mxu0 0
        %1028 = vmatpush1.bf16.msra.mxu0 %v975
        %1029 = vmatprep.subr.bf16.mxu0 0
        %1030 = vmatpush1.bf16.msra.mxu0 %v976
        %1031 = vmatprep.subr.bf16.mxu0 0
        %1032 = vmatpush1.bf16.msra.mxu0 %v977
        %1033 = vmatprep.subr.bf16.mxu0 0
        %1034 = vmatpush1.bf16.msra.mxu0 %v978
        %1035 = vmatprep.subr.bf16.mxu0 0
        %1036 = vmatpush1.bf16.msra.mxu0 %v979
        %1037 = vmatprep.subr.bf16.mxu0 0
        %1038 = vmatpush1.bf16.msra.mxu0 %v980
        %1039 = vmatprep.subr.bf16.mxu0 0
        %1040 = vmatpush1.bf16.msra.mxu0 %v981
        %1041 = vmatprep.subr.bf16.mxu0 0
        %1042 = vmatpush1.bf16.msra.mxu0 %v982
        %1043 = vmatprep.subr.bf16.mxu0 0
        %1044 = vmatpush1.bf16.msra.mxu0 %v983
        %1045 = vmatprep.subr.bf16.mxu0 0
        %1046 = vmatpush1.bf16.msra.mxu0 %v984
        %1047 = vmatprep.subr.bf16.mxu0 0
        %1048 = vmatpush1.bf16.msra.mxu0 %v985
        %1049 = vmatprep.subr.bf16.mxu0 0
        %1050 = vmatpush1.bf16.msra.mxu0 %v986
        %1051 = vmatprep.mubr.bf16.mxu0 %v864
        %1052 = vmatmul.mubr.bf16.gmra.mrb[0].mxu0 %v863
        %v1053 = vpop.f32.mrb[0].mxu0
        %v1054 = vadd.f32 %v781, %v1053
        %v1055 = vpop.f32.mrb[0].mxu0
        %v1056 = vpop.f32.mrb[0].mxu0
        %v1057 = vadd.f32 %v784, %v1056
        %v1058 = vpop.f32.mrb[0].mxu0
        %1059 = vmatprep.mubr.bf16.mxu0 %v867
        %1060 = vmatmul.mubr.bf16.gmra.mrb[0].mxu0 %v866
        %v1061 = vpop.f32.mrb[0].mxu0
        %v1062 = vadd.f32 %v789, %v1061
        %v1063 = vpop.f32.mrb[0].mxu0
        %v1064 = vpop.f32.mrb[0].mxu0
        %v1065 = vadd.f32 %v792, %v1064
        %v1066 = vpop.f32.mrb[0].mxu0
        %1067 = vmatprep.mubr.bf16.mxu0 %v458
        %1068 = vmatmul.mubr.bf16.gmra.mrb[0].mxu0 %v457
        %v1069 = vpop.f32.mrb[0].mxu0
        %v1070 = vadd.f32 %v797, %v1069
        %v1071 = vpop.f32.mrb[0].mxu0
        %v1072 = vpop.f32.mrb[0].mxu0
        %v1073 = vadd.f32 %v800, %v1072
        %v1074 = vpop.f32.mrb[0].mxu0
        %1075 = vmatprep.mubr.bf16.mxu0 %v461
        %1076 = vmatmul.mubr.bf16.gmra.mrb[0].mxu0 %v460
        %v1077 = vpop.f32.mrb[0].mxu0
        %v1078 = vadd.f32 %v805, %v1077
        %v1079 = vpop.f32.mrb[0].mxu0
        %v1080 = vpop.f32.mrb[0].mxu0
        %v1081 = vadd.f32 %v808, %v1080
        %v1082 = vpop.f32.mrb[0].mxu0
        %1083 = vmatprep.mubr.bf16.mxu0 %v464
        %1084 = vmatmul.mubr.bf16.gmra.mrb[0].mxu0 %v463
        %v1085 = vpop.f32.mrb[0].mxu0
        %v1086 = vadd.f32 %v813, %v1085
        %v1087 = vpop.f32.mrb[0].mxu0
        %v1088 = vpop.f32.mrb[0].mxu0
        %v1089 = vadd.f32 %v816, %v1088
        %v1090 = vpop.f32.mrb[0].mxu0
        %1091 = vmatprep.mubr.bf16.mxu0 %v467
        %1092 = vmatmul.mubr.bf16.gmra.mrb[0].mxu0 %v466
        %v1093 = vpop.f32.mrb[0].mxu0
        %v1094 = vadd.f32 %v821, %v1093
        %v1095 = vpop.f32.mrb[0].mxu0
        %v1096 = vpop.f32.mrb[0].mxu0
        %v1097 = vadd.f32 %v824, %v1096
        %v1098 = vpop.f32.mrb[0].mxu0
        %1099 = vmatprep.mubr.bf16.mxu0 %v470
        %1100 = vmatmul.mubr.bf16.gmra.mrb[0].mxu0 %v469
        %v1101 = vpop.f32.mrb[0].mxu0
        %v1102 = vadd.f32 %v829, %v1101
        %v1103 = vpop.f32.mrb[0].mxu0
        %v1104 = vpop.f32.mrb[0].mxu0
        %v1105 = vadd.f32 %v832, %v1104
        %v1106 = vpop.f32.mrb[0].mxu0
        %1107 = vmatprep.mubr.bf16.mxu0 %v473
        %1108 = vmatmul.mubr.bf16.gmra.mrb[0].mxu0 %v472
        %v1109 = vpop.f32.mrb[0].mxu0
        %v1110 = vadd.f32 %v837, %v1109
        %v1111 = vpop.f32.mrb[0].mxu0
        %v1112 = vpop.f32.mrb[0].mxu0
        %v1113 = vadd.f32 %v840, %v1112
        %v1114 = vpop.f32.mrb[0].mxu0
        %1115 = vdwg.mxu0
        %1116 = vmatprep.subr.bf16.mxu0 0
        %1117 = vmatpush1.bf16.msra.mxu0 %v987
        %1118 = vmatprep.subr.bf16.mxu0 0
        %1119 = vmatpush1.bf16.msra.mxu0 %v988
        %1120 = vmatprep.subr.bf16.mxu0 0
        %1121 = vmatpush1.bf16.msra.mxu0 %v989
        %1122 = vmatprep.subr.bf16.mxu0 0
        %1123 = vmatpush1.bf16.msra.mxu0 %v990
        %1124 = vmatprep.subr.bf16.mxu0 0
        %1125 = vmatpush1.bf16.msra.mxu0 %v991
        %1126 = vmatprep.subr.bf16.mxu0 0
        %1127 = vmatpush1.bf16.msra.mxu0 %v992
        %1128 = vmatprep.subr.bf16.mxu0 0
        %1129 = vmatpush1.bf16.msra.mxu0 %v993
        %1130 = vmatprep.subr.bf16.mxu0 0
        %1131 = vmatpush1.bf16.msra.mxu0 %v994
        %1132 = vmatprep.subr.bf16.mxu0 0
        %1133 = vmatpush1.bf16.msra.mxu0 0
        %1134 = vmatprep.subr.bf16.mxu0 0
        %1135 = vmatpush1.bf16.msra.mxu0 0
        %1136 = vmatprep.subr.bf16.mxu0 0
        %1137 = vmatpush1.bf16.msra.mxu0 0
        %1138 = vmatprep.subr.bf16.mxu0 0
        %1139 = vmatpush1.bf16.msra.mxu0 0
        %1140 = vmatprep.subr.bf16.mxu0 0
        %1141 = vmatpush1.bf16.msra.mxu0 0
        %1142 = vmatprep.subr.bf16.mxu0 0
        %1143 = vmatpush1.bf16.msra.mxu0 0
        %1144 = vmatprep.subr.bf16.mxu0 0
        %1145 = vmatpush1.bf16.msra.mxu0 0
        %1146 = vmatprep.subr.bf16.mxu0 0
        %1147 = vmatpush1.bf16.msra.mxu0 0
        %1148 = vmatprep.mubr.bf16.mxu0 0
        %1149 = vmatmul.mubr.bf16.gmra.mrb[0].mxu0 %v865
        %v1150 = vpop.f32.mrb[0].mxu0
        %v1151 = vadd.f32 %v1054, %v1150
        %v1152 = vpop.f32.mrb[0].mxu0
        %v1153 = vpop.f32.mrb[0].mxu0
        %v1154 = vadd.f32 %v1057, %v1153
        %v1155 = vpop.f32.mrb[0].mxu0
        %1156 = vmatprep.mubr.bf16.mxu0 0
        %1157 = vmatmul.mubr.bf16.gmra.mrb[0].mxu0 %v868
        %v1158 = vpop.f32.mrb[0].mxu0
        %v1159 = vadd.f32 %v1062, %v1158
        %v1160 = vpop.f32.mrb[0].mxu0
        %v1161 = vpop.f32.mrb[0].mxu0
        %v1162 = vadd.f32 %v1065, %v1161
        %v1163 = vpop.f32.mrb[0].mxu0
        %1164 = vmatprep.mubr.bf16.mxu0 0
        %1165 = vmatmul.mubr.bf16.gmra.mrb[0].mxu0 %v459
        %v1166 = vpop.f32.mrb[0].mxu0
        %v1167 = vadd.f32 %v1070, %v1166
        %v1168 = vpop.f32.mrb[0].mxu0
        %v1169 = vpop.f32.mrb[0].mxu0
        %v1170 = vadd.f32 %v1073, %v1169
        %v1171 = vpop.f32.mrb[0].mxu0
        %1172 = vmatprep.mubr.bf16.mxu0 0
        %1173 = vmatmul.mubr.bf16.gmra.mrb[0].mxu0 %v462
        %v1174 = vpop.f32.mrb[0].mxu0
        %v1175 = vadd.f32 %v1078, %v1174
        %v1176 = vpop.f32.mrb[0].mxu0
        %v1177 = vpop.f32.mrb[0].mxu0
        %v1178 = vadd.f32 %v1081, %v1177
        %v1179 = vpop.f32.mrb[0].mxu0
        %1180 = vmatprep.mubr.bf16.mxu0 0
        %1181 = vmatmul.mubr.bf16.gmra.mrb[0].mxu0 %v465
        %v1182 = vpop.f32.mrb[0].mxu0
        %v1183 = vadd.f32 %v1086, %v1182
        %v1184 = vpop.f32.mrb[0].mxu0
        %v1185 = vpop.f32.mrb[0].mxu0
        %v1186 = vadd.f32 %v1089, %v1185
        %v1187 = vpop.f32.mrb[0].mxu0
        %1188 = vmatprep.mubr.bf16.mxu0 0
        %1189 = vmatmul.mubr.bf16.gmra.mrb[0].mxu0 %v468
        %v1190 = vpop.f32.mrb[0].mxu0
        %v1191 = vadd.f32 %v1094, %v1190
        %v1192 = vpop.f32.mrb[0].mxu0
        %v1193 = vpop.f32.mrb[0].mxu0
        %v1194 = vadd.f32 %v1097, %v1193
        %v1195 = vpop.f32.mrb[0].mxu0
        %1196 = vmatprep.mubr.bf16.mxu0 0
        %1197 = vmatmul.mubr.bf16.gmra.mrb[0].mxu0 %v471
        %v1198 = vpop.f32.mrb[0].mxu0
        %v1199 = vadd.f32 %v1102, %v1198
        %v1200 = vpop.f32.mrb[0].mxu0
        %v1201 = vpop.f32.mrb[0].mxu0
        %v1202 = vadd.f32 %v1105, %v1201
        %v1203 = vpop.f32.mrb[0].mxu0
        %1204 = vmatprep.mubr.bf16.mxu0 0
        %1205 = vmatmul.mubr.bf16.gmra.mrb[0].mxu0 %v474
        %v1206 = vpop.f32.mrb[0].mxu0
        %v1207 = vadd.f32 %v1110, %v1206
        %v1208 = vpop.f32.mrb[0].mxu0
        %v1209 = vpop.f32.mrb[0].mxu0
        %v1210 = vadd.f32 %v1113, %v1209
        %v1211 = vpop.f32.mrb[0].mxu0
        %1212 = vdwg.mxu0
        %v1213 = vld [vmem:[%s206 + $0x60] sm:$0xff]
        %v1214 = vld [vmem:[%s206 + $0x68] sm:$0xf]
        %v1215 = vld [vmem:[%s206 + $0x6c] sm:$0xff]
        %v1216 = vld [vmem:[%s206 + $0x74] sm:$0xf]
        %v1217 = vld [vmem:[%s206 + $0x78] sm:$0xff]
        %v1218 = vld [vmem:[%s206 + $0x80] sm:$0xf]
        %v1219 = vld [vmem:[%s206 + $0x84] sm:$0xff]
        %v1220 = vld [vmem:[%s206 + $0x8c] sm:$0xf]
        %v1221 = vld [vmem:[%s206 + $0x90] sm:$0xff]
        %v1222 = vld [vmem:[%s206 + $0x98] sm:$0xf]
        %v1223 = vld [vmem:[%s206 + $0x9c] sm:$0xff]
        %v1224 = vld [vmem:[%s206 + $0xa4] sm:$0xf]
        %v1225 = vld [vmem:[%s206 + $0xa8] sm:$0xff]
        %v1226 = vld [vmem:[%s206 + $0xb0] sm:$0xf]
        %v1227 = vld [vmem:[%s206 + $0xb4] sm:$0xff]
        %v1228 = vld [vmem:[%s206 + $0xbc] sm:$0xf]
        %v1229 = vld [vmem:[%s206 + $0xc0] sm:$0xff]
        %v1230 = vld [vmem:[%s206 + $0xc8] sm:$0xf]
        %v1231 = vld [vmem:[%s206 + $0xcc] sm:$0xff]
        %v1232 = vld [vmem:[%s206 + $0xd4] sm:$0xf]
        %v1233 = vld [vmem:[%s206 + $0xd8] sm:$0xff]
        %v1234 = vld [vmem:[%s206 + $0xe0] sm:$0xf]
        %v1235 = vld [vmem:[%s206 + $0xe4] sm:$0xff]
        %v1236 = vld [vmem:[%s206 + $0xec] sm:$0xf]
        %v1237 = vld [vmem:[%s206 + $0xf0] sm:$0xff]
        %v1238 = vld [vmem:[%s206 + $0xf8] sm:$0xf]
        %v1239 = vld [vmem:[%s206 + $0xfc] sm:$0xff]
        %v1240 = vld [vmem:[%s206 + $0x104] sm:$0xf]
        %v1241 = vld [vmem:[%s206 + $0x108] sm:$0xff]
        %v1242 = vld [vmem:[%s206 + $0x110] sm:$0xf]
        %v1243 = vld [vmem:[%s206 + $0x114] sm:$0xff]
        %v1244 = vld [vmem:[%s206 + $0x11c] sm:$0xf]
        %s1245 = scalar_lea.vmem [#allocation5], 384
        %v1246 = vld [vmem:[%s1245] sm:$0xf]
        %v1247 = vld [vmem:[%s1245 + $0x4] sm:$0xf]
        %v1248 = vld [vmem:[%s1245 + $0x8] sm:$0xf]
        %v1249 = vld [vmem:[%s1245 + $0xc] sm:$0xf]
        %v1250 = vld [vmem:[%s1245 + $0x10] sm:$0xf]
        %v1251 = vld [vmem:[%s1245 + $0x14] sm:$0xf]
        %v1252 = vld [vmem:[%s1245 + $0x18] sm:$0xf]
        %v1253 = vld [vmem:[%s1245 + $0x1c] sm:$0xf]
        %v1254 = vld [vmem:[%s1245 + $0x20] sm:$0xf]
        %v1255 = vld [vmem:[%s1245 + $0x24] sm:$0xf]
        %v1256 = vld [vmem:[%s1245 + $0x28] sm:$0xf]
        %v1257 = vld [vmem:[%s1245 + $0x2c] sm:$0xf]
        %v1258 = vld [vmem:[%s1245 + $0x30] sm:$0xf]
        %v1259 = vld [vmem:[%s1245 + $0x34] sm:$0xf]
        %v1260 = vld [vmem:[%s1245 + $0x38] sm:$0xf]
        %v1261 = vld [vmem:[%s1245 + $0x3c] sm:$0xf]
        %v1262 = vld [vmem:[%s1245 + $0x40] sm:$0xf]
        %v1263 = vld [vmem:[%s1245 + $0x44] sm:$0xf]
        %v1264 = vld [vmem:[%s1245 + $0x48] sm:$0xf]
        %v1265 = vld [vmem:[%s1245 + $0x4c] sm:$0xf]
        %v1266 = vld [vmem:[%s1245 + $0x50] sm:$0xf]
        %v1267 = vld [vmem:[%s1245 + $0x54] sm:$0xf]
        %v1268 = vld [vmem:[%s1245 + $0x58] sm:$0xf]
        %v1269 = vld [vmem:[%s1245 + $0x5c] sm:$0xf]
        %v1270 = vld [vmem:[%s1245 + $0x60] sm:$0xf]
        %v1271 = vld [vmem:[%s1245 + $0x64] sm:$0xf]
        %v1272 = vld [vmem:[%s1245 + $0x68] sm:$0xf]
        %v1273 = vld [vmem:[%s1245 + $0x6c] sm:$0xf]
        %v1274 = vld [vmem:[%s1245 + $0x70] sm:$0xf]
        %v1275 = vld [vmem:[%s1245 + $0x74] sm:$0xf]
        %v1276 = vld [vmem:[%s1245 + $0x78] sm:$0xf]
        %v1277 = vld [vmem:[%s1245 + $0x7c] sm:$0xf]
        %v1278 = vld [vmem:[%s1245 + $0x80] sm:$0xf]
        %v1279 = vld [vmem:[%s1245 + $0x84] sm:$0xf]
        %v1280 = vld [vmem:[%s1245 + $0x88] sm:$0xf]
        %v1281 = vld [vmem:[%s1245 + $0x8c] sm:$0xf]
        %v1282 = vld [vmem:[%s1245 + $0x90] sm:$0xf]
        %v1283 = vld [vmem:[%s1245 + $0x94] sm:$0xf]
        %v1284 = vld [vmem:[%s1245 + $0x98] sm:$0xf]
        %v1285 = vld [vmem:[%s1245 + $0x9c] sm:$0xf]
        %v1286 = vld [vmem:[%s1245 + $0xa0] sm:$0xf]
        %v1287 = vld [vmem:[%s1245 + $0xa4] sm:$0xf]
        %v1288 = vld [vmem:[%s1245 + $0xa8] sm:$0xf]
        %v1289 = vld [vmem:[%s1245 + $0xac] sm:$0xf]
        %v1290 = vld [vmem:[%s1245 + $0xb0] sm:$0xf]
        %v1291 = vld [vmem:[%s1245 + $0xb4] sm:$0xf]
        %v1292 = vld [vmem:[%s1245 + $0xb8] sm:$0xf]
        %v1293 = vld [vmem:[%s1245 + $0xbc] sm:$0xf]
        %v1326 = vunpack.c.l.b16 %v1213
        %v1327 = vunpack.c.h.b16 %v1213
        %v1328 = vunpack.c.l.b16 %v1214
        %v1329 = vunpack.c.l.b16 %v1215
        %v1330 = vunpack.c.h.b16 %v1215
        %v1331 = vunpack.c.l.b16 %v1216
        %v1332 = vunpack.c.l.b16 %v1217
        %v1333 = vunpack.c.h.b16 %v1217
        %v1334 = vunpack.c.l.b16 %v1218
        %v1335 = vunpack.c.l.b16 %v1219
        %v1336 = vunpack.c.h.b16 %v1219
        %v1337 = vunpack.c.l.b16 %v1220
        %v1338 = vunpack.c.l.b16 %v1221
        %v1339 = vunpack.c.h.b16 %v1221
        %v1340 = vunpack.c.l.b16 %v1222
        %v1341 = vunpack.c.l.b16 %v1223
        %v1342 = vunpack.c.h.b16 %v1223
        %v1343 = vunpack.c.l.b16 %v1224
        %v1344 = vunpack.c.l.b16 %v1225
        %v1345 = vunpack.c.h.b16 %v1225
        %v1346 = vunpack.c.l.b16 %v1226
        %v1347 = vunpack.c.l.b16 %v1227
        %v1348 = vunpack.c.h.b16 %v1227
        %v1349 = vunpack.c.l.b16 %v1228
        %v1350 = vunpack.c.l.b16 %v1229
        %v1351 = vunpack.c.h.b16 %v1229
        %v1352 = vunpack.c.l.b16 %v1230
        %v1353 = vunpack.c.l.b16 %v1231
        %v1354 = vunpack.c.h.b16 %v1231
        %v1355 = vunpack.c.l.b16 %v1232
        %v1356 = vunpack.c.l.b16 %v1233
        %v1357 = vunpack.c.h.b16 %v1233
        %v1358 = vunpack.c.l.b16 %v1234
        %v1359 = vunpack.c.l.b16 %v1235
        %v1360 = vunpack.c.h.b16 %v1235
        %v1361 = vunpack.c.l.b16 %v1236
        %v1362 = vunpack.c.l.b16 %v1237
        %v1363 = vunpack.c.h.b16 %v1237
        %v1364 = vunpack.c.l.b16 %v1238
        %v1365 = vunpack.c.l.b16 %v1239
        %v1366 = vunpack.c.h.b16 %v1239
        %v1367 = vunpack.c.l.b16 %v1240
        %v1368 = vunpack.c.l.b16 %v1241
        %v1369 = vunpack.c.h.b16 %v1241
        %v1370 = vunpack.c.l.b16 %v1242
        %v1371 = vunpack.c.l.b16 %v1243
        %v1372 = vunpack.c.h.b16 %v1243
        %v1373 = vunpack.c.l.b16 %v1244
        %v1374 = vpack.c.b16 %v1329, %v1326
        %v1375 = vpack.c.b16 %v1330, %v1327
        %v1376 = vpack.c.b16 %v1331, %v1328
        %v1377 = vpack.c.b16 %v1335, %v1332
        %v1378 = vpack.c.b16 %v1336, %v1333
        %v1379 = vpack.c.b16 %v1337, %v1334
        %v1380 = vpack.c.b16 %v1341, %v1338
        %v1381 = vpack.c.b16 %v1342, %v1339
        %v1382 = vpack.c.b16 %v1343, %v1340
        %v1383 = vpack.c.b16 %v1347, %v1344
        %v1384 = vpack.c.b16 %v1348, %v1345
        %v1385 = vpack.c.b16 %v1349, %v1346
        %v1386 = vpack.c.b16 %v1353, %v1350
        %v1387 = vpack.c.b16 %v1354, %v1351
        %v1388 = vpack.c.b16 %v1355, %v1352
        %v1389 = vpack.c.b16 %v1359, %v1356
        %v1390 = vpack.c.b16 %v1360, %v1357
        %v1391 = vpack.c.b16 %v1361, %v1358
        %v1392 = vpack.c.b16 %v1365, %v1362
        %v1393 = vpack.c.b16 %v1366, %v1363
        %v1394 = vpack.c.b16 %v1367, %v1364
        %v1395 = vpack.c.b16 %v1371, %v1368
        %v1396 = vpack.c.b16 %v1372, %v1369
        %v1397 = vpack.c.b16 %v1373, %v1370
        %v1470 = vunpack.c.l.b16 %v1246
        %v1471 = vunpack.c.l.b16 %v1247
        %v1472 = vunpack.c.l.b16 %v1248
        %v1473 = vunpack.c.l.b16 %v1249
        %v1474 = vunpack.c.l.b16 %v1250
        %v1475 = vunpack.c.l.b16 %v1251
        %v1476 = vunpack.c.l.b16 %v1252
        %v1477 = vunpack.c.l.b16 %v1253
        %v1478 = vunpack.c.l.b16 %v1254
        %v1479 = vunpack.c.l.b16 %v1255
        %v1480 = vunpack.c.l.b16 %v1256
        %v1481 = vunpack.c.l.b16 %v1257
        %v1482 = vunpack.c.l.b16 %v1258
        %v1483 = vunpack.c.l.b16 %v1259
        %v1484 = vunpack.c.l.b16 %v1260
        %v1485 = vunpack.c.l.b16 %v1261
        %v1486 = vunpack.c.l.b16 %v1262
        %v1487 = vunpack.c.l.b16 %v1263
        %v1488 = vunpack.c.l.b16 %v1264
        %v1489 = vunpack.c.l.b16 %v1265
        %v1490 = vunpack.c.l.b16 %v1266
        %v1491 = vunpack.c.l.b16 %v1267
        %v1492 = vunpack.c.l.b16 %v1268
        %v1493 = vunpack.c.l.b16 %v1269
        %v1494 = vunpack.c.l.b16 %v1270
        %v1495 = vunpack.c.l.b16 %v1271
        %v1496 = vunpack.c.l.b16 %v1272
        %v1497 = vunpack.c.l.b16 %v1273
        %v1498 = vunpack.c.l.b16 %v1274
        %v1499 = vunpack.c.l.b16 %v1275
        %v1500 = vunpack.c.l.b16 %v1276
        %v1501 = vunpack.c.l.b16 %v1277
        %v1502 = vunpack.c.l.b16 %v1278
        %v1503 = vunpack.c.l.b16 %v1279
        %v1504 = vunpack.c.l.b16 %v1280
        %v1505 = vunpack.c.l.b16 %v1281
        %v1506 = vunpack.c.l.b16 %v1282
        %v1507 = vunpack.c.l.b16 %v1283
        %v1508 = vunpack.c.l.b16 %v1284
        %v1509 = vunpack.c.l.b16 %v1285
        %v1510 = vunpack.c.l.b16 %v1286
        %v1511 = vunpack.c.l.b16 %v1287
        %v1512 = vunpack.c.l.b16 %v1288
        %v1513 = vunpack.c.l.b16 %v1289
        %v1514 = vunpack.c.l.b16 %v1290
        %v1515 = vunpack.c.l.b16 %v1291
        %v1516 = vunpack.c.l.b16 %v1292
        %v1517 = vunpack.c.l.b16 %v1293
        %v1518 = vpack.c.b16 %v1471, %v1470
        %v1519 = vpack.c.b16 %v1473, %v1472
        %v1520 = vpack.c.b16 %v1475, %v1474
        %v1521 = vpack.c.b16 %v1477, %v1476
        %v1522 = vpack.c.b16 %v1479, %v1478
        %v1523 = vpack.c.b16 %v1481, %v1480
        %v1524 = vpack.c.b16 %v1483, %v1482
        %v1525 = vpack.c.b16 %v1485, %v1484
        %v1526 = vpack.c.b16 %v1487, %v1486
        %v1527 = vpack.c.b16 %v1489, %v1488
        %v1528 = vpack.c.b16 %v1491, %v1490
        %v1529 = vpack.c.b16 %v1493, %v1492
        %v1530 = vpack.c.b16 %v1495, %v1494
        %v1531 = vpack.c.b16 %v1497, %v1496
        %v1532 = vpack.c.b16 %v1499, %v1498
        %v1533 = vpack.c.b16 %v1501, %v1500
        %v1534 = vpack.c.b16 %v1503, %v1502
        %v1535 = vpack.c.b16 %v1505, %v1504
        %v1536 = vpack.c.b16 %v1507, %v1506
        %v1537 = vpack.c.b16 %v1509, %v1508
        %v1538 = vpack.c.b16 %v1511, %v1510
        %v1539 = vpack.c.b16 %v1513, %v1512
        %v1540 = vpack.c.b16 %v1515, %v1514
        %v1541 = vpack.c.b16 %v1517, %v1516
        %1566 = vmatprep.subr.bf16.mxu0 0
        %1567 = vmatpush1.bf16.msra.mxu0 %v1518
        %1568 = vmatprep.subr.bf16.mxu0 0
        %1569 = vmatpush1.bf16.msra.mxu0 %v1519
        %1570 = vmatprep.subr.bf16.mxu0 0
        %1571 = vmatpush1.bf16.msra.mxu0 %v1520
        %1572 = vmatprep.subr.bf16.mxu0 0
        %1573 = vmatpush1.bf16.msra.mxu0 %v1521
        %1574 = vmatprep.subr.bf16.mxu0 0
        %1575 = vmatpush1.bf16.msra.mxu0 %v1522
        %1576 = vmatprep.subr.bf16.mxu0 0
        %1577 = vmatpush1.bf16.msra.mxu0 %v1523
        %1578 = vmatprep.subr.bf16.mxu0 0
        %1579 = vmatpush1.bf16.msra.mxu0 %v1524
        %1580 = vmatprep.subr.bf16.mxu0 0
        %1581 = vmatpush1.bf16.msra.mxu0 %v1525
        %1582 = vmatprep.subr.bf16.mxu0 0
        %1583 = vmatpush1.bf16.msra.mxu0 %v1526
        %1584 = vmatprep.subr.bf16.mxu0 0
        %1585 = vmatpush1.bf16.msra.mxu0 %v1527
        %1586 = vmatprep.subr.bf16.mxu0 0
        %1587 = vmatpush1.bf16.msra.mxu0 %v1528
        %1588 = vmatprep.subr.bf16.mxu0 0
        %1589 = vmatpush1.bf16.msra.mxu0 %v1529
        %1590 = vmatprep.subr.bf16.mxu0 0
        %1591 = vmatpush1.bf16.msra.mxu0 %v1530
        %1592 = vmatprep.subr.bf16.mxu0 0
        %1593 = vmatpush1.bf16.msra.mxu0 %v1531
        %1594 = vmatprep.subr.bf16.mxu0 0
        %1595 = vmatpush1.bf16.msra.mxu0 %v1532
        %1596 = vmatprep.subr.bf16.mxu0 0
        %1597 = vmatpush1.bf16.msra.mxu0 %v1533
        %1598 = vmatprep.mubr.bf16.mxu0 %v1375
        %1599 = vmatmul.mubr.bf16.gmra.mrb[0].mxu0 %v1374
        %v1600 = vpop.f32.mrb[0].mxu0
        %v1601 = vadd.f32 0.0, %v1600
        %v1602 = vpop.f32.mrb[0].mxu0
        %v1603 = vpop.f32.mrb[0].mxu0
        %v1604 = vadd.f32 0.0, %v1603
        %v1605 = vpop.f32.mrb[0].mxu0
        %1606 = vmatprep.mubr.bf16.mxu0 %v1378
        %1607 = vmatmul.mubr.bf16.gmra.mrb[0].mxu0 %v1377
        %v1608 = vpop.f32.mrb[0].mxu0
        %v1609 = vadd.f32 0.0, %v1608
        %v1610 = vpop.f32.mrb[0].mxu0
        %v1611 = vpop.f32.mrb[0].mxu0
        %v1612 = vadd.f32 0.0, %v1611
        %v1613 = vpop.f32.mrb[0].mxu0
        %1614 = vmatprep.mubr.bf16.mxu0 %v1381
        %1615 = vmatmul.mubr.bf16.gmra.mrb[0].mxu0 %v1380
        %v1616 = vpop.f32.mrb[0].mxu0
        %v1617 = vadd.f32 0.0, %v1616
        %v1618 = vpop.f32.mrb[0].mxu0
        %v1619 = vpop.f32.mrb[0].mxu0
        %v1620 = vadd.f32 0.0, %v1619
        %v1621 = vpop.f32.mrb[0].mxu0
        %1622 = vmatprep.mubr.bf16.mxu0 %v1384
        %1623 = vmatmul.mubr.bf16.gmra.mrb[0].mxu0 %v1383
        %v1624 = vpop.f32.mrb[0].mxu0
        %v1625 = vadd.f32 0.0, %v1624
        %v1626 = vpop.f32.mrb[0].mxu0
        %v1627 = vpop.f32.mrb[0].mxu0
        %v1628 = vadd.f32 0.0, %v1627
        %v1629 = vpop.f32.mrb[0].mxu0
        %1630 = vmatprep.mubr.bf16.mxu0 %v1387
        %1631 = vmatmul.mubr.bf16.gmra.mrb[0].mxu0 %v1386
        %v1632 = vpop.f32.mrb[0].mxu0
        %v1633 = vadd.f32 0.0, %v1632
        %v1634 = vpop.f32.mrb[0].mxu0
        %v1635 = vpop.f32.mrb[0].mxu0
        %v1636 = vadd.f32 0.0, %v1635
        %v1637 = vpop.f32.mrb[0].mxu0
        %1638 = vmatprep.mubr.bf16.mxu0 %v1390
        %1639 = vmatmul.mubr.bf16.gmra.mrb[0].mxu0 %v1389
        %v1640 = vpop.f32.mrb[0].mxu0
        %v1641 = vadd.f32 0.0, %v1640
        %v1642 = vpop.f32.mrb[0].mxu0
        %v1643 = vpop.f32.mrb[0].mxu0
        %v1644 = vadd.f32 0.0, %v1643
        %v1645 = vpop.f32.mrb[0].mxu0
        %1646 = vmatprep.mubr.bf16.mxu0 %v1393
        %1647 = vmatmul.mubr.bf16.gmra.mrb[0].mxu0 %v1392
        %v1648 = vpop.f32.mrb[0].mxu0
        %v1649 = vadd.f32 0.0, %v1648
        %v1650 = vpop.f32.mrb[0].mxu0
        %v1651 = vpop.f32.mrb[0].mxu0
        %v1652 = vadd.f32 0.0, %v1651
        %v1653 = vpop.f32.mrb[0].mxu0
        %1654 = vmatprep.mubr.bf16.mxu0 %v1396
        %1655 = vmatmul.mubr.bf16.gmra.mrb[0].mxu0 %v1395
        %v1656 = vpop.f32.mrb[0].mxu0
        %v1657 = vadd.f32 0.0, %v1656
        %v1658 = vpop.f32.mrb[0].mxu0
        %v1659 = vpop.f32.mrb[0].mxu0
        %v1660 = vadd.f32 0.0, %v1659
        %v1661 = vpop.f32.mrb[0].mxu0
        %1662 = vdwg.mxu0
        %1663 = vmatprep.subr.bf16.mxu0 0
        %1664 = vmatpush1.bf16.msra.mxu0 %v1534
        %1665 = vmatprep.subr.bf16.mxu0 0
        %1666 = vmatpush1.bf16.msra.mxu0 %v1535
        %1667 = vmatprep.subr.bf16.mxu0 0
        %1668 = vmatpush1.bf16.msra.mxu0 %v1536
        %1669 = vmatprep.subr.bf16.mxu0 0
        %1670 = vmatpush1.bf16.msra.mxu0 %v1537
        %1671 = vmatprep.subr.bf16.mxu0 0
        %1672 = vmatpush1.bf16.msra.mxu0 %v1538
        %1673 = vmatprep.subr.bf16.mxu0 0
        %1674 = vmatpush1.bf16.msra.mxu0 %v1539
        %1675 = vmatprep.subr.bf16.mxu0 0
        %1676 = vmatpush1.bf16.msra.mxu0 %v1540
        %1677 = vmatprep.subr.bf16.mxu0 0
        %1678 = vmatpush1.bf16.msra.mxu0 %v1541
        %1679 = vmatprep.subr.bf16.mxu0 0
        %1680 = vmatpush1.bf16.msra.mxu0 0
        %1681 = vmatprep.subr.bf16.mxu0 0
        %1682 = vmatpush1.bf16.msra.mxu0 0
        %1683 = vmatprep.subr.bf16.mxu0 0
        %1684 = vmatpush1.bf16.msra.mxu0 0
        %1685 = vmatprep.subr.bf16.mxu0 0
        %1686 = vmatpush1.bf16.msra.mxu0 0
        %1687 = vmatprep.subr.bf16.mxu0 0
        %1688 = vmatpush1.bf16.msra.mxu0 0
        %1689 = vmatprep.subr.bf16.mxu0 0
        %1690 = vmatpush1.bf16.msra.mxu0 0
        %1691 = vmatprep.subr.bf16.mxu0 0
        %1692 = vmatpush1.bf16.msra.mxu0 0
        %1693 = vmatprep.subr.bf16.mxu0 0
        %1694 = vmatpush1.bf16.msra.mxu0 0
        %1695 = vmatprep.mubr.bf16.mxu0 0
        %1696 = vmatmul.mubr.bf16.gmra.mrb[0].mxu0 %v1376
        %v1697 = vpop.f32.mrb[0].mxu0
        %v1698 = vadd.f32 %v1601, %v1697
        %v1699 = vpop.f32.mrb[0].mxu0
        %v1700 = vpop.f32.mrb[0].mxu0
        %v1701 = vadd.f32 %v1604, %v1700
        %v1702 = vpop.f32.mrb[0].mxu0
        %1703 = vmatprep.mubr.bf16.mxu0 0
        %1704 = vmatmul.mubr.bf16.gmra.mrb[0].mxu0 %v1379
        %v1705 = vpop.f32.mrb[0].mxu0
        %v1706 = vadd.f32 %v1609, %v1705
        %v1707 = vpop.f32.mrb[0].mxu0
        %v1708 = vpop.f32.mrb[0].mxu0
        %v1709 = vadd.f32 %v1612, %v1708
        %v1710 = vpop.f32.mrb[0].mxu0
        %1711 = vmatprep.mubr.bf16.mxu0 0
        %1712 = vmatmul.mubr.bf16.gmra.mrb[0].mxu0 %v1382
        %v1713 = vpop.f32.mrb[0].mxu0
        %v1714 = vadd.f32 %v1617, %v1713
        %v1715 = vpop.f32.mrb[0].mxu0
        %v1716 = vpop.f32.mrb[0].mxu0
        %v1717 = vadd.f32 %v1620, %v1716
        %v1718 = vpop.f32.mrb[0].mxu0
        %1719 = vmatprep.mubr.bf16.mxu0 0
        %1720 = vmatmul.mubr.bf16.gmra.mrb[0].mxu0 %v1385
        %v1721 = vpop.f32.mrb[0].mxu0
        %v1722 = vadd.f32 %v1625, %v1721
        %v1723 = vpop.f32.mrb[0].mxu0
        %v1724 = vpop.f32.mrb[0].mxu0
        %v1725 = vadd.f32 %v1628, %v1724
        %v1726 = vpop.f32.mrb[0].mxu0
        %1727 = vmatprep.mubr.bf16.mxu0 0
        %1728 = vmatmul.mubr.bf16.gmra.mrb[0].mxu0 %v1388
        %v1729 = vpop.f32.mrb[0].mxu0
        %v1730 = vadd.f32 %v1633, %v1729
        %v1731 = vpop.f32.mrb[0].mxu0
        %v1732 = vpop.f32.mrb[0].mxu0
        %v1733 = vadd.f32 %v1636, %v1732
        %v1734 = vpop.f32.mrb[0].mxu0
        %1735 = vmatprep.mubr.bf16.mxu0 0
        %1736 = vmatmul.mubr.bf16.gmra.mrb[0].mxu0 %v1391
        %v1737 = vpop.f32.mrb[0].mxu0
        %v1738 = vadd.f32 %v1641, %v1737
        %v1739 = vpop.f32.mrb[0].mxu0
        %v1740 = vpop.f32.mrb[0].mxu0
        %v1741 = vadd.f32 %v1644, %v1740
        %v1742 = vpop.f32.mrb[0].mxu0
        %1743 = vmatprep.mubr.bf16.mxu0 0
        %1744 = vmatmul.mubr.bf16.gmra.mrb[0].mxu0 %v1394
        %v1745 = vpop.f32.mrb[0].mxu0
        %v1746 = vadd.f32 %v1649, %v1745
        %v1747 = vpop.f32.mrb[0].mxu0
        %v1748 = vpop.f32.mrb[0].mxu0
        %v1749 = vadd.f32 %v1652, %v1748
        %v1750 = vpop.f32.mrb[0].mxu0
        %1751 = vmatprep.mubr.bf16.mxu0 0
        %1752 = vmatmul.mubr.bf16.gmra.mrb[0].mxu0 %v1397
        %v1753 = vpop.f32.mrb[0].mxu0
        %v1754 = vadd.f32 %v1657, %v1753
        %v1755 = vpop.f32.mrb[0].mxu0
        %v1756 = vpop.f32.mrb[0].mxu0
        %v1757 = vadd.f32 %v1660, %v1756
        %v1758 = vpop.f32.mrb[0].mxu0
        %1759 = vdwg.mxu0
        %v1760 = vadd.f32 %v1151, %v1698
        %v1761 = vadd.f32 %v1154, %v1701
        %v1762 = vadd.f32 %v1159, %v1706
        %v1763 = vadd.f32 %v1162, %v1709
        %v1764 = vadd.f32 %v1167, %v1714
        %v1765 = vadd.f32 %v1170, %v1717
        %v1766 = vadd.f32 %v1175, %v1722
        %v1767 = vadd.f32 %v1178, %v1725
        %v1768 = vadd.f32 %v1183, %v1730
        %v1769 = vadd.f32 %v1186, %v1733
        %v1770 = vadd.f32 %v1191, %v1738
        %v1771 = vadd.f32 %v1194, %v1741
        %v1772 = vadd.f32 %v1199, %v1746
        %v1773 = vadd.f32 %v1202, %v1749
        %v1774 = vadd.f32 %v1207, %v1754
        %v1775 = vadd.f32 %v1210, %v1757
        %v1776 = vld [vmem:[%s238] sm:$0x1]
        %v1778 = vlaneseq
        %v1779 = vshrl.u32 %v1778, 7
        %v1780 = vsub.s32 0, %v1779
        %v1781 = vrot.slane %v1776, %v1780
        %v1783 = vadd.f32 %v1760, %v1781
        %v1784 = vadd.f32 %v1761, %v1781
        %v1785 = vadd.f32 %v1762, %v1781
        %v1786 = vadd.f32 %v1763, %v1781
        %v1787 = vadd.f32 %v1764, %v1781
        %v1788 = vadd.f32 %v1765, %v1781
        %v1789 = vadd.f32 %v1766, %v1781
        %v1790 = vadd.f32 %v1767, %v1781
        %v1791 = vadd.f32 %v1768, %v1781
        %v1792 = vadd.f32 %v1769, %v1781
        %v1793 = vadd.f32 %v1770, %v1781
        %v1794 = vadd.f32 %v1771, %v1781
        %v1795 = vadd.f32 %v1772, %v1781
        %v1796 = vadd.f32 %v1773, %v1781
        %v1797 = vadd.f32 %v1774, %v1781
        %v1798 = vadd.f32 %v1775, %v1781
        %v1799 = vmax.f32 %v1783, 0.0
        %v1800 = vmax.f32 %v1784, 0.0
        %v1801 = vmax.f32 %v1785, 0.0
        %v1802 = vmax.f32 %v1786, 0.0
        %v1803 = vmax.f32 %v1787, 0.0
        %v1804 = vmax.f32 %v1788, 0.0
        %v1805 = vmax.f32 %v1789, 0.0
        %v1806 = vmax.f32 %v1790, 0.0
        %v1807 = vmax.f32 %v1791, 0.0
        %v1808 = vmax.f32 %v1792, 0.0
        %v1809 = vmax.f32 %v1793, 0.0
        %v1810 = vmax.f32 %v1794, 0.0
        %v1811 = vmax.f32 %v1795, 0.0
        %v1812 = vmax.f32 %v1796, 0.0
        %v1813 = vmax.f32 %v1797, 0.0
        %v1814 = vmax.f32 %v1798, 0.0
        %v1815 = vpack.c.bf16 %v1800, %v1799
        %v1816 = vpack.c.bf16 %v1802, %v1801
        %v1817 = vpack.c.bf16 %v1804, %v1803
        %v1818 = vpack.c.bf16 %v1806, %v1805
        %v1819 = vpack.c.bf16 %v1808, %v1807
        %v1820 = vpack.c.bf16 %v1810, %v1809
        %v1821 = vpack.c.bf16 %v1812, %v1811
        %v1822 = vpack.c.bf16 %v1814, %v1813
        %v1831 = vunpack.c.l.b16 %v1815
        %v1832 = vunpack.c.h.b16 %v1815
        %v1833 = vunpack.c.l.b16 %v1816
        %v1834 = vunpack.c.h.b16 %v1816
        %v1835 = vunpack.c.l.b16 %v1817
        %v1836 = vunpack.c.h.b16 %v1817
        %v1837 = vunpack.c.l.b16 %v1818
        %v1838 = vunpack.c.h.b16 %v1818
        %v1839 = vunpack.c.l.b16 %v1819
        %v1840 = vunpack.c.h.b16 %v1819
        %v1841 = vunpack.c.l.b16 %v1820
        %v1842 = vunpack.c.h.b16 %v1820
        %v1843 = vunpack.c.l.b16 %v1821
        %v1844 = vunpack.c.h.b16 %v1821
        %v1845 = vunpack.c.l.b16 %v1822
        %v1846 = vunpack.c.h.b16 %v1822
        %v1847 = vpack.c.b16 %v1831, %v1831
        %v1848 = vpack.c.b16 %v1832, %v1832
        %v1849 = vpack.c.b16 %v1833, %v1833
        %v1850 = vpack.c.b16 %v1834, %v1834
        %v1851 = vpack.c.b16 %v1835, %v1835
        %v1852 = vpack.c.b16 %v1836, %v1836
        %v1853 = vpack.c.b16 %v1837, %v1837
        %v1854 = vpack.c.b16 %v1838, %v1838
        %v1855 = vpack.c.b16 %v1839, %v1839
        %v1856 = vpack.c.b16 %v1840, %v1840
        %v1857 = vpack.c.b16 %v1841, %v1841
        %v1858 = vpack.c.b16 %v1842, %v1842
        %v1859 = vpack.c.b16 %v1843, %v1843
        %v1860 = vpack.c.b16 %v1844, %v1844
        %v1861 = vpack.c.b16 %v1845, %v1845
        %v1862 = vpack.c.b16 %v1846, %v1846
        %1879 = vst [vmem:[%s235] sm:$0xf] %v1847
        %1880 = vst [vmem:[%s235 + $0x4] sm:$0xf] %v1848
        %1881 = vst [vmem:[%s235 + $0x8] sm:$0xf] %v1849
        %1882 = vst [vmem:[%s235 + $0xc] sm:$0xf] %v1850
        %1883 = vst [vmem:[%s235 + $0x10] sm:$0xf] %v1851
        %1884 = vst [vmem:[%s235 + $0x14] sm:$0xf] %v1852
        %1885 = vst [vmem:[%s235 + $0x18] sm:$0xf] %v1853
        %1886 = vst [vmem:[%s235 + $0x1c] sm:$0xf] %v1854
        %1887 = vst [vmem:[%s235 + $0x20] sm:$0xf] %v1855
        %1888 = vst [vmem:[%s235 + $0x24] sm:$0xf] %v1856
        %1889 = vst [vmem:[%s235 + $0x28] sm:$0xf] %v1857
        %1890 = vst [vmem:[%s235 + $0x2c] sm:$0xf] %v1858
        %1891 = vst [vmem:[%s235 + $0x30] sm:$0xf] %v1859
        %1892 = vst [vmem:[%s235 + $0x34] sm:$0xf] %v1860
        %1893 = vst [vmem:[%s235 + $0x38] sm:$0xf] %v1861
        %1894 = vst [vmem:[%s235 + $0x3c] sm:$0xf] %v1862
        %s1895 = sand.u32 %s121, 1
        %s1896 = scalar_lea.sflag [#allocation4], %s1895
        %s1897 = sand.u32 %s121, 1
        %s1898 = smul.addr %s1897, 64
        %s1899 = scalar_lea.vmem [#allocation7], %s1898
        // Predicated region
        $region41: #{tpu_custom_call.1} parent=31 // pred_check
          %p1900 = pneg %p131
        $region42: #{tpu_custom_call.1} parent=31 // pred_check_branch
          %1902 = sbr.rel (%p1900) target = $region44
        $region43: #{tpu_custom_call.1} parent=31 // pred_region
          %s1904 = ssub.s32 1024, 1024
          %1905 = vsyncadd %s1896, %s1904
          %s1906 = smul.addr %s26, 16
          %s1907 = sadd.s32 %s25, %s1906
          %s1908 = smul.addr %s1907, 64
          %s1909 = scalar_lea.hbm %s3, %s1908
          %s1910 = sshll.u32 %s1899, 4
          %s1911 = int_to_ptr.vmem [resolvable:$true] %s1910
          %1916 = dma.vmem_to_hbm [thread:$0]  %s1911, 1024, %s1909, %s1896, 64, 64, 4
        $region44: #{tpu_custom_call.1} parent=31 // pred_fallthru
          _
      $region32: #{tpu_custom_call.1} parent=5 // pred_fallthru
        _
      %p1917 = scmp.le.s32.totalorder 2, %s16
      // Predicated region
      $region45: #{tpu_custom_call.1} parent=5 // pred_check
        %p1918 = pneg %p1917
      $region46: #{tpu_custom_call.1} parent=5 // pred_check_branch
        %1920 = sbr.rel (%p1918) target = $region48
      $region47: #{tpu_custom_call.1} parent=5 // pred_region
        %s1921 = ssub.s32 %s16, 2
        // Predicated region
        $region49: #{tpu_custom_call.1} parent=47 // pred_check
          %p1922 = pneg %p137
        $region50: #{tpu_custom_call.1} parent=47 // pred_check_branch
          %1924 = sbr.rel (%p1922) target = $region52
        $region51: #{tpu_custom_call.1} parent=47 // pred_region
          %s1925 = sand.u32 %s122, 1
          %s1926 = scalar_lea.sflag [#allocation4], %s1925
          %s1927 = sand.u32 %s122, 1
          %s1928 = smul.addr %s1927, 64
          %s1929 = scalar_lea.vmem [#allocation7], %s1928
          %1930 = dma.done %s1926, 1024
        $region52: #{tpu_custom_call.1} parent=47 // pred_fallthru
          _
      $region48: #{tpu_custom_call.1} parent=5 // pred_fallthru
        _
    $region6: #{tpu_custom_call.1} parent=1 // loop_footer
      %s20 = sadd.s32 1, %s16
    $region7: #{tpu_custom_call.1} parent=1 // loop_footer_branch
      %15 = sbr.rel target = $region3
    $region8: #{tpu_custom_call.1} parent=1 // loop_exit
      _
    %1931 = vsyncpa [#allocation3], 1
    %s1932 = scalar_lea.sflag [#allocation3], 1
    %1933 = vsyncpa %s1932, 1
    %1934 = vsyncpa [#allocation6], 1
    %1935 = vsyncpa [#allocation4], 1
    %s1936 = scalar_lea.sflag [#allocation4], 1
    %1937 = vsyncpa %s1936, 1

</llo_original>
